<compile_context>
chip_gen: v6e
topology: v6e:2x2x1
jax: 0.10.0
libtpu: 0.0.40
codegen_flags: <defaults>
</compile_context>

<pallas_src>
import math

import jax
import jax.numpy as jnp
from jax.experimental import pallas as pl
from jax.experimental.pallas import tpu as pltpu

EPS = 1e-5
NEG_INF = -1e30
_TARGET_PAIR_ROWS = 384  # stacked O-M pair rows per grid step (3x128 / ~1.5x256)


def _round_up(x, m):
    return (x + m - 1) // m * m


def _pick_batch_block(batch, pairs):
    """Instances per grid step: ~384 stacked pair rows, multiple of 8, no over-pad."""
    target = max(8, _round_up(max(1, _TARGET_PAIR_ROWS // pairs), 8))
    return max(8, min(_round_up(batch, 8), target))


# --------------------------------------------------------------------------- #
# Fused forward kernel (one grid step = b_blk instances, BP = b_blk * P pairs)
# --------------------------------------------------------------------------- #
def _fused_forward_kernel(
    x_ref,       # (BP, F)  stacked per-pair raw features [ope | ma | proc]
    mask_ref,    # (1, BP)  eligibility mask (0/1), lane-dense row layout
    bias_ref,    # (BP, BP) 0 / -1e30 block-diagonal (same-instance) attention bias
    pool_ref,    # (b_blk, BP) per-instance mean-pool matrix (1/P on own pairs)
    wq_ref, bq_ref, wk_ref, bk_ref, wv_ref, bv_ref,   # fused embed∘QKV (scale in Wq)
    wpre_ref, bpre_ref,                               # fused embed∘actor-layer-1 (h_act path)
    aw1a_ref,                                         # actor layer-1, attention path
    aw2t_ref, ab2_ref,                                # actor head (w2^T, b2)
    cw1_ref, cb1_ref, cw2_ref, cb2_ref,               # critic MLP
    probs_ref, graph_ref, value_ref,
):
    f32 = jnp.float32
    x = x_ref[...].astype(f32)                                            # (BP, F)

    # ---- embedding + QKV + actor-layer-1(h_act path), all folded into 4 dots ----
    q = jnp.dot(x, wq_ref[...], preferred_element_type=f32) + bq_ref[...]     # (BP, D3)
    k = jnp.dot(x, wk_ref[...], preferred_element_type=f32) + bk_ref[...]     # (BP, D3)
    v = jnp.dot(x, wv_ref[...], preferred_element_type=f32) + bv_ref[...]     # (BP, D3)
    pre = jnp.dot(x, wpre_ref[...], preferred_element_type=f32) + bpre_ref[...]  # (BP, H)

    # ---- per-instance (block-diagonal) self-attention over stacked O-M pairs ----
    # TODO(synk): OMPairAttention not in reference; self-attention + residual
    #             concat + mean-pooled graph embedding used as stand-in.
    s = jax.lax.dot_general(q, k, (((1,), (1,)), ((), ())),
                            preferred_element_type=f32)                       # (BP, BP)
    s = s + bias_ref[...]                                                     # mask cross-instance
    s = s - jnp.max(s, axis=-1, keepdims=True)
    p = jnp.exp(s)
    p = p * pl.reciprocal(jnp.sum(p, axis=-1, keepdims=True), approx=True)
    att = jnp.dot(p, v, preferred_element_type=f32)                           # (BP, D3)

    # ---- per-instance mean-pooled graph embedding (pooling as an MXU dot) ----
    graph = jnp.dot(pool_ref[...], att, preferred_element_type=f32)           # (b_blk, D3)
    graph_ref[...] = graph.astype(graph_ref.dtype)

    # ---- actor MLP on concat([h_act, att]); h_act path already folded into `pre` ----
    # TODO(synk): SimpleMLP not in reference; Linear -> tanh -> Linear used.
    hid = jnp.tanh(pre + jnp.dot(att, aw1a_ref[...], preferred_element_type=f32))  # (BP, H)
    # lane-dense (1, BP) score row: w2^T contracted against the hidden activations
    score = jax.lax.dot_general(aw2t_ref[...], hid, (((1,), (1,)), ((), ())),
                                preferred_element_type=f32) + ab2_ref[...]    # (1, BP)

    # ---- masked per-instance softmax, kept in the flat lane-dense layout ----
    mask = mask_ref[...]                                                       # (1, BP)
    sm = jnp.where(mask > 0.5, score, NEG_INF)
    sm = sm - jnp.max(sm, axis=-1, keepdims=True)       # single shift, valid per instance
    e = jnp.where(mask > 0.5, jnp.exp(sm), 0.0)
    same = (bias_ref[...] > -1.0).astype(f32)            # (BP, BP) same-instance 0/1
    denom = jnp.dot(e, same, preferred_element_type=f32)                       # (1, BP)
    # exact divide for the action probabilities (PPO log-probs / entropy)
    probs_ref[...] = (e / jnp.maximum(denom, 1e-30)).astype(probs_ref.dtype)

    # ---- critic head on the pooled graph embedding ----
    hc = jnp.tanh(jnp.dot(graph, cw1_ref[...], preferred_element_type=f32) + cb1_ref[...])
    value_ref[...] = (jnp.dot(hc, cw2_ref[...], preferred_element_type=f32)
                      + cb2_ref[...]).astype(value_ref.dtype)


def fused_forward(params, x_pair, mask, b_blk):
    """x_pair: (B_pad, P, F) raw per-pair features; mask: (B_pad, P) float 0/1."""
    B_pad, P, F = x_pair.shape
    nb = B_pad // b_blk
    BP = b_blk * P
    D3 = params['aw1a'].shape[0]

    x_flat = x_pair.reshape(B_pad * P, F)
    mask_b = mask.reshape(nb, 1, BP)

    # block-diagonal structural constants (same-instance attention bias & pooling)
    seg = jnp.arange(BP, dtype=jnp.int32) // P
    same = seg[:, None] == seg[None, :]
    attn_bias = jnp.where(same, 0.0, NEG_INF).astype(jnp.float32)          # (BP, BP)
    pool = ((jnp.arange(b_blk, dtype=jnp.int32)[:, None] == seg[None, :])
            .astype(jnp.float32) / float(P))                               # (b_blk, BP)

    def cspec(shape):
        # Constant-index blocks: Pallas does not re-fetch when the block index
        # does not change across grid steps, so weights are DMA'd once.
        return pl.BlockSpec(shape, lambda i, _s=len(shape): (0,) * _s)

    grid_spec = pltpu.PrefetchScalarGridSpec(
        num_scalar_prefetch=0,
        grid=(nb,),
        in_specs=[
            pl.BlockSpec((BP, F), lambda i: (i, 0)),              # x (stacked pair rows)
            pl.BlockSpec((None, 1, BP), lambda i: (i, 0, 0)),     # mask (lane-dense row)
            cspec((BP, BP)),                                      # attention bias
            cspec((b_blk, BP)),                                   # pooling matrix
            cspec(params['wq'].shape), cspec(params['bq'].shape),
            cspec(params['wk'].shape), cspec(params['bk'].shape),
            cspec(params['wv'].shape), cspec(params['bv'].shape),
            cspec(params['wpre'].shape), cspec(params['bpre'].shape),
            cspec(params['aw1a'].shape),
            cspec(params['aw2t'].shape), cspec(params['ab2'].shape),
            cspec(params['cw1'].shape), cspec(params['cb1'].shape),
            cspec(params['cw2'].shape), cspec(params['cb2'].shape),
        ],
        out_specs=(
            pl.BlockSpec((None, 1, BP), lambda i: (i, 0, 0)),     # probs (lane-dense row)
            pl.BlockSpec((b_blk, D3), lambda i: (i, 0)),          # graph
            pl.BlockSpec((b_blk, 1), lambda i: (i, 0)),           # value
        ),
    )
    probs, graph, value = pl.pallas_call(
        _fused_forward_kernel,
        grid_spec=grid_spec,
        out_shape=(jax.ShapeDtypeStruct((nb, 1, BP), jnp.float32),
                   jax.ShapeDtypeStruct((B_pad, D3), jnp.float32),
                   jax.ShapeDtypeStruct((B_pad, 1), jnp.float32)),
        compiler_params=pltpu.CompilerParams(
            dimension_semantics=("parallel",),            # blocks split across v7x's 2 TCs
            vmem_limit_bytes=32 * 1024 * 1024),
    )(x_flat, mask_b, attn_bias, pool,
      params['wq'], params['bq'], params['wk'], params['bk'],
      params['wv'], params['bv'], params['wpre'], params['bpre'],
      params['aw1a'], params['aw2t'], params['ab2'],
      params['cw1'], params['cb1'], params['cw2'], params['cb2'])
    return probs.reshape(B_pad, P), graph, value[:, 0]


# --------------------------------------------------------------------------- #
# jitted host drivers (cheap gather / normalize / layout glue stays in XLA)
# --------------------------------------------------------------------------- #
@jax.jit
def _forward(params, raw_opes, raw_mas, proc_time, jobs_gather, eligible):
    B, _, Fo = raw_opes.shape
    M, Fm = raw_mas.shape[1], raw_mas.shape[2]
    J = jobs_gather.shape[1]
    P = M * J

    # per-instance node normalization (torch: mean/std over dim=-2, unbiased)
    def _node_norm(x):
        mu = jnp.mean(x, axis=-2, keepdims=True)
        sd = jnp.std(x, axis=-2, keepdims=True, ddof=1)
        return (x - mu) / (sd + EPS)

    norm_opes = _node_norm(raw_opes)
    norm_mas = _node_norm(raw_mas)
    # global feature_normalize of proc_time (flag_sample/flag_train branch)
    mu_p = jnp.mean(proc_time)
    sd_p = jnp.std(proc_time, ddof=1)
    norm_proc = (proc_time - mu_p) / (sd_p + EPS)

    jobs = jobs_gather.astype(jnp.int32)
    norm_jobs = jnp.take_along_axis(norm_opes, jobs[:, :, None], axis=1)       # (B, J, Fo)
    proc_jobs = jnp.take_along_axis(norm_proc, jobs[:, :, None], axis=1)       # (B, J, M)

    # per O-M pair raw features, pair index p = m*J + j (matches scores.flatten(1))
    jobs_pair = jnp.broadcast_to(norm_jobs[:, None, :, :], (B, M, J, Fo))
    mas_pair = jnp.broadcast_to(norm_mas[:, :, None, :], (B, M, J, Fm))
    proc_pair = jnp.transpose(proc_jobs, (0, 2, 1))[..., None]                 # (B, M, J, 1)
    x_pair = jnp.concatenate([jobs_pair, mas_pair, proc_pair],
                             axis=-1).reshape(B, P, Fo + Fm + 1)
    mask = jnp.transpose(eligible, (0, 2, 1)).reshape(B, P).astype(jnp.float32)

    b_blk = _pick_batch_block(B, P)
    B_pad = _round_up(B, b_blk)
    if B_pad > B:                                   # padded instances: zero feats, all-masked
        x_pair = jnp.pad(x_pair, ((0, B_pad - B), (0, 0), (0, 0)))
        mask = jnp.pad(mask, ((0, B_pad - B), (0, 0)))

    probs, graph, values = fused_forward(params, x_pair, mask, b_blk)
    return probs[:B], graph[:B], values[:B]


@jax.jit
def _evaluate(params, raw_opes, raw_mas, proc_time, jobs_gather, eligible, action_envs):
    probs, _graph, values = _forward(params, raw_opes, raw_mas, proc_time,
                                     jobs_gather, eligible)
    picked = jnp.take_along_axis(probs, action_envs[:, None].astype(jnp.int32), axis=1)[:, 0]
    action_logprobs = jnp.log(picked)
    safe_log = jnp.log(jnp.where(probs > 0, probs, 1.0))
    dist_entropys = -jnp.sum(probs * safe_log, axis=1)
    # TODO(synk): torch's .double() cast on state_values omitted (JAX x64 disabled).
    return action_logprobs, values, dist_entropys


# --------------------------------------------------------------------------- #
# Model (parameters initialized deterministically in-script, then pre-fused)
# --------------------------------------------------------------------------- #
def _init_linear(key, fan_in, fan_out):
    kw, kb = jax.random.split(key)
    bound = 1.0 / math.sqrt(fan_in)
    w = jax.random.uniform(kw, (fan_in, fan_out), jnp.float32, -bound, bound)
    b = jax.random.uniform(kb, (1, fan_out), jnp.float32, -bound, bound)
    return w, b


class TransformerSchedulerPallas:
    def __init__(self, model_paras, key):
        self.in_size_ma = model_paras['in_size_ma']
        self.in_size_ope = model_paras['in_size_ope']
        self.out_size_ma = model_paras['out_size_ma']
        self.out_size_ope = model_paras['out_size_ope']
        self.actor_dim = model_paras['actor_in_dim']
        self.action_dim = model_paras['action_dim']
        assert self.out_size_ope == self.actor_dim and self.out_size_ma == self.actor_dim
        assert self.action_dim == 1
        d = self.actor_dim
        D3 = 3 * d
        Fo, Fm = self.in_size_ope, self.in_size_ma
        ks = jax.random.split(key, 8)
        # TODO(synk): EmbeddingNetwork not in reference; linear node/edge embeddings used.
        w_ope, b_ope = _init_linear(ks[0], Fo, d)
        w_ma, b_ma = _init_linear(ks[1], Fm, d)
        w_proc, b_proc = _init_linear(ks[2], 1, d)
        wq, _ = _init_linear(ks[3], D3, D3)
        wk, _ = _init_linear(ks[4], D3, D3)
        wv, _ = _init_linear(ks[5], D3, D3)
        # actor = SimpleMLP(2 * actual_dim, action_dim, 2 * 2 * actual_dim)
        aw1, ab1 = _init_linear(jax.random.fold_in(ks[6], 0), 2 * D3, 4 * D3)
        aw2, ab2 = _init_linear(jax.random.fold_in(ks[6], 1), 4 * D3, self.action_dim)
        # critic = SimpleMLP(actual_dim, 1, 2 * actual_dim)
        cw1, cb1 = _init_linear(jax.random.fold_in(ks[7], 0), D3, 2 * D3)
        cw2, cb2 = _init_linear(jax.random.fold_in(ks[7], 1), 2 * D3, 1)

        # --- parameter-space pre-fusion (done ONCE at init, exact algebra) ---
        # h_act(pair) = concat([h_job, h_ma, h_proc]) = x_pair @ W_emb + b_emb with a
        # block-diagonal W_emb, so the in-kernel concat/gather assembly disappears.
        F_pair = Fo + Fm + 1
        W_emb = jnp.zeros((F_pair, D3), jnp.float32)
        W_emb = W_emb.at[:Fo, :d].set(w_ope)
        W_emb = W_emb.at[Fo:Fo + Fm, d:2 * d].set(w_ma)
        W_emb = W_emb.at[Fo + Fm:, 2 * d:].set(w_proc)
        b_emb = jnp.concatenate([b_ope, b_ma, b_proc], axis=1)                 # (1, D3)
        wq_s = wq / math.sqrt(D3)       # fold 1/sqrt(D) attention scale into Wq
        aw1h, aw1a = aw1[:D3, :], aw1[D3:, :]   # split actor layer 1: h_act / att paths
        self.params = dict(
            wq=W_emb @ wq_s, bq=b_emb @ wq_s,
            wk=W_emb @ wk, bk=b_emb @ wk,
            wv=W_emb @ wv, bv=b_emb @ wv,
            wpre=W_emb @ aw1h, bpre=b_emb @ aw1h + ab1,
            aw1a=aw1a, aw2t=aw2.T, ab2=ab2,
            cw1=cw1, cb1=cb1, cw2=cw2, cb2=cb2)

    def get_action_prob(self, raw_opes, raw_mas, proc_time, jobs_gather, eligible):
        probs, graph, _ = _forward(self.params, raw_opes, raw_mas, proc_time,
                                   jobs_gather, eligible)
        return probs, graph

    def evaluate(self, raw_opes, raw_mas, proc_time, jobs_gather, eligible, action_envs):
        return _evaluate(self.params, raw_opes, raw_mas, proc_time,
                         jobs_gather, eligible, action_envs)


# --------------------------------------------------------------------------- #
if __name__ == "__main__":
    key = jax.random.PRNGKey(0)
    B, N_OPE, N_MA, N_JOB = 2, 8, 4, 3
    model_paras = dict(
        device=None,
        in_size_ma=3, out_size_ma=16, in_size_ope=6, out_size_ope=16,
        hidden_size_ope=32, actor_in_dim=16, critic_in_dim=48,
        n_latent_actor=64, n_latent_critic=64, n_hidden_actor=3, n_hidden_critic=3,
        action_dim=1, num_heads=1, dropout=0.0)

    k_model, k_opes, k_mas, k_proc, k_jobs, k_elig, k_act = jax.random.split(key, 7)
    model = TransformerSchedulerPallas(model_paras, k_model)

    raw_opes = jax.random.normal(k_opes, (B, N_OPE, model_paras['in_size_ope']), jnp.float32)
    raw_mas = jax.random.normal(k_mas, (B, N_MA, model_paras['in_size_ma']), jnp.float32)
    proc_time = jax.random.uniform(k_proc, (B, N_OPE, N_MA), jnp.float32, 0.0, 10.0)
    jobs_gather = jax.random.randint(k_jobs, (B, N_JOB), 0, N_OPE)
    eligible = jax.random.bernoulli(k_elig, 0.6, (B, N_JOB, N_MA))
    eligible = eligible.at[:, 0, 0].set(True)      # guarantee an eligible O-M pair
    action_envs = jax.random.randint(k_act, (B,), 0, N_MA * N_JOB)

    probs, graph = model.get_action_prob(raw_opes, raw_mas, proc_time, jobs_gather, eligible)
    logp, values, ent = model.evaluate(raw_opes, raw_mas, proc_time,
                                       jobs_gather, eligible, action_envs)
    jax.block_until_ready((probs, graph, logp, values, ent))

    # sanity: every instance has >=1 eligible pair, so action probs sum to 1
    row_sums = jnp.sum(probs, axis=-1)
    assert bool(jnp.all(jnp.abs(row_sums - 1.0) < 1e-4)), row_sums
    assert bool(jnp.all(jnp.isfinite(values))) and bool(jnp.all(jnp.isfinite(ent)))
    print("KERNEL_OK")
</pallas_src>

<mosaic_0001>
module attributes {stable_mosaic.version = 11 : i64} {
  func.func @_fused_forward_kernel(%arg0: i32, %arg1: memref<96x10xf32, #tpu.memory_space<vmem>>, %arg2: memref<1x1x96xf32, #tpu.memory_space<vmem>>, %arg3: memref<96x96xf32, #tpu.memory_space<vmem>>, %arg4: memref<8x96xf32, #tpu.memory_space<vmem>>, %arg5: memref<10x48xf32, #tpu.memory_space<vmem>>, %arg6: memref<1x48xf32, #tpu.memory_space<vmem>>, %arg7: memref<10x48xf32, #tpu.memory_space<vmem>>, %arg8: memref<1x48xf32, #tpu.memory_space<vmem>>, %arg9: memref<10x48xf32, #tpu.memory_space<vmem>>, %arg10: memref<1x48xf32, #tpu.memory_space<vmem>>, %arg11: memref<10x192xf32, #tpu.memory_space<vmem>>, %arg12: memref<1x192xf32, #tpu.memory_space<vmem>>, %arg13: memref<48x192xf32, #tpu.memory_space<vmem>>, %arg14: memref<1x192xf32, #tpu.memory_space<vmem>>, %arg15: memref<1x1xf32, #tpu.memory_space<vmem>>, %arg16: memref<48x96xf32, #tpu.memory_space<vmem>>, %arg17: memref<1x96xf32, #tpu.memory_space<vmem>>, %arg18: memref<96x1xf32, #tpu.memory_space<vmem>>, %arg19: memref<1x1xf32, #tpu.memory_space<vmem>>, %arg20: memref<1x1x96xf32, #tpu.memory_space<vmem>>, %arg21: memref<8x48xf32, #tpu.memory_space<vmem>>, %arg22: memref<8x1xf32, #tpu.memory_space<vmem>>) attributes {dimension_semantics = [#tpu.dimension_semantics<parallel>], iteration_bounds = array<i64: 1>, scalar_prefetch = 0 : i64, scratch_operands = 0 : i64, tpu.core_type = #tpu.core_type<tc>, window_params = [{transform_indices = @transform_0, window_bounds = array<i64: 96, 10>}, {transform_indices = @transform_1, window_bounds = array<i64: 1, 1, 96>}, {pipeline_mode = #tpu.pipeline_mode<synchronous>, transform_indices = @transform_2, window_bounds = array<i64: 96, 96>}, {pipeline_mode = #tpu.pipeline_mode<synchronous>, transform_indices = @transform_3, window_bounds = array<i64: 8, 96>}, {pipeline_mode = #tpu.pipeline_mode<synchronous>, transform_indices = @transform_4, window_bounds = array<i64: 10, 48>}, {pipeline_mode = #tpu.pipeline_mode<synchronous>, transform_indices = @transform_5, window_bounds = array<i64: 1, 48>}, {pipeline_mode = #tpu.pipeline_mode<synchronous>, transform_indices = @transform_6, window_bounds = array<i64: 10, 48>}, {pipeline_mode = #tpu.pipeline_mode<synchronous>, transform_indices = @transform_7, window_bounds = array<i64: 1, 48>}, {pipeline_mode = #tpu.pipeline_mode<synchronous>, transform_indices = @transform_8, window_bounds = array<i64: 10, 48>}, {pipeline_mode = #tpu.pipeline_mode<synchronous>, transform_indices = @transform_9, window_bounds = array<i64: 1, 48>}, {pipeline_mode = #tpu.pipeline_mode<synchronous>, transform_indices = @transform_10, window_bounds = array<i64: 10, 192>}, {pipeline_mode = #tpu.pipeline_mode<synchronous>, transform_indices = @transform_11, window_bounds = array<i64: 1, 192>}, {pipeline_mode = #tpu.pipeline_mode<synchronous>, transform_indices = @transform_12, window_bounds = array<i64: 48, 192>}, {pipeline_mode = #tpu.pipeline_mode<synchronous>, transform_indices = @transform_13, window_bounds = array<i64: 1, 192>}, {pipeline_mode = #tpu.pipeline_mode<synchronous>, transform_indices = @transform_14, window_bounds = array<i64: 1, 1>}, {pipeline_mode = #tpu.pipeline_mode<synchronous>, transform_indices = @transform_15, window_bounds = array<i64: 48, 96>}, {pipeline_mode = #tpu.pipeline_mode<synchronous>, transform_indices = @transform_16, window_bounds = array<i64: 1, 96>}, {pipeline_mode = #tpu.pipeline_mode<synchronous>, transform_indices = @transform_17, window_bounds = array<i64: 96, 1>}, {pipeline_mode = #tpu.pipeline_mode<synchronous>, transform_indices = @transform_18, window_bounds = array<i64: 1, 1>}, {transform_indices = @transform_19, window_bounds = array<i64: 1, 1, 96>}, {transform_indices = @transform_20, window_bounds = array<i64: 8, 48>}, {transform_indices = @transform_21, window_bounds = array<i64: 8, 1>}]} {
    %c0 = arith.constant 0 : index
    %c0_0 = arith.constant 0 : index
    %0 = vector.load %arg1[%c0, %c0_0] : memref<96x10xf32, #tpu.memory_space<vmem>>, vector<96x10xf32>
    %c0_1 = arith.constant 0 : index
    %c0_2 = arith.constant 0 : index
    %1 = vector.load %arg5[%c0_1, %c0_2] : memref<10x48xf32, #tpu.memory_space<vmem>>, vector<10x48xf32>
    %cst = arith.constant dense<0.000000e+00> : vector<96x48xf32>
    %2 = tpu.matmul %0, %1, %cst {dimension_numbers = #tpu.dot_dimension_numbers<[1], [0], [0], [1], [0, 0, 1, 1], [], []>} : vector<96x10xf32>, vector<10x48xf32>, vector<96x48xf32> -> vector<96x48xf32>
    %c0_3 = arith.constant 0 : index
    %c0_4 = arith.constant 0 : index
    %3 = vector.load %arg6[%c0_3, %c0_4] : memref<1x48xf32, #tpu.memory_space<vmem>>, vector<1x48xf32>
    %4 = vector.broadcast %3 : vector<1x48xf32> to vector<96x48xf32>
    %5 = arith.addf %2, %4 : vector<96x48xf32>
    %c0_5 = arith.constant 0 : index
    %c0_6 = arith.constant 0 : index
    %6 = vector.load %arg7[%c0_5, %c0_6] : memref<10x48xf32, #tpu.memory_space<vmem>>, vector<10x48xf32>
    %cst_7 = arith.constant dense<0.000000e+00> : vector<96x48xf32>
    %7 = tpu.matmul %0, %6, %cst_7 {dimension_numbers = #tpu.dot_dimension_numbers<[1], [0], [0], [1], [0, 0, 1, 1], [], []>} : vector<96x10xf32>, vector<10x48xf32>, vector<96x48xf32> -> vector<96x48xf32>
    %c0_8 = arith.constant 0 : index
    %c0_9 = arith.constant 0 : index
    %8 = vector.load %arg8[%c0_8, %c0_9] : memref<1x48xf32, #tpu.memory_space<vmem>>, vector<1x48xf32>
    %9 = vector.broadcast %8 : vector<1x48xf32> to vector<96x48xf32>
    %10 = arith.addf %7, %9 : vector<96x48xf32>
    %c0_10 = arith.constant 0 : index
    %c0_11 = arith.constant 0 : index
    %11 = vector.load %arg9[%c0_10, %c0_11] : memref<10x48xf32, #tpu.memory_space<vmem>>, vector<10x48xf32>
    %cst_12 = arith.constant dense<0.000000e+00> : vector<96x48xf32>
    %12 = tpu.matmul %0, %11, %cst_12 {dimension_numbers = #tpu.dot_dimension_numbers<[1], [0], [0], [1], [0, 0, 1, 1], [], []>} : vector<96x10xf32>, vector<10x48xf32>, vector<96x48xf32> -> vector<96x48xf32>
    %c0_13 = arith.constant 0 : index
    %c0_14 = arith.constant 0 : index
    %13 = vector.load %arg10[%c0_13, %c0_14] : memref<1x48xf32, #tpu.memory_space<vmem>>, vector<1x48xf32>
    %14 = vector.broadcast %13 : vector<1x48xf32> to vector<96x48xf32>
    %15 = arith.addf %12, %14 : vector<96x48xf32>
    %c0_15 = arith.constant 0 : index
    %c0_16 = arith.constant 0 : index
    %16 = vector.load %arg11[%c0_15, %c0_16] : memref<10x192xf32, #tpu.memory_space<vmem>>, vector<10x192xf32>
    %cst_17 = arith.constant dense<0.000000e+00> : vector<96x192xf32>
    %17 = tpu.matmul %0, %16, %cst_17 {dimension_numbers = #tpu.dot_dimension_numbers<[1], [0], [0], [1], [0, 0, 1, 1], [], []>} : vector<96x10xf32>, vector<10x192xf32>, vector<96x192xf32> -> vector<96x192xf32>
    %c0_18 = arith.constant 0 : index
    %c0_19 = arith.constant 0 : index
    %18 = vector.load %arg12[%c0_18, %c0_19] : memref<1x192xf32, #tpu.memory_space<vmem>>, vector<1x192xf32>
    %19 = vector.broadcast %18 : vector<1x192xf32> to vector<96x192xf32>
    %20 = arith.addf %17, %19 : vector<96x192xf32>
    %cst_20 = arith.constant dense<0.000000e+00> : vector<96x96xf32>
    %21 = tpu.matmul %5, %10, %cst_20 {dimension_numbers = #tpu.dot_dimension_numbers<[1], [1], [0], [0], [0, 0, 1, 0], [], []>} : vector<96x48xf32>, vector<96x48xf32>, vector<96x96xf32> -> vector<96x96xf32>
    %c0_21 = arith.constant 0 : index
    %c0_22 = arith.constant 0 : index
    %22 = vector.load %arg3[%c0_21, %c0_22] : memref<96x96xf32, #tpu.memory_space<vmem>>, vector<96x96xf32>
    %23 = arith.addf %21, %22 : vector<96x96xf32>
    %cst_23 = arith.constant dense<0xFF800000> : vector<96xf32>
    %24 = vector.multi_reduction <maximumf>, %23, %cst_23 [1] : vector<96x96xf32> to vector<96xf32>
    %25 = vector.shape_cast %24 : vector<96xf32> to vector<96x1xf32>
    %26 = vector.broadcast %25 : vector<96x1xf32> to vector<96x96xf32>
    %27 = arith.subf %23, %26 : vector<96x96xf32>
    %28 = math.exp %27 : vector<96x96xf32>
    %cst_24 = arith.constant dense<0.000000e+00> : vector<96xf32>
    %29 = vector.multi_reduction <add>, %28, %cst_24 [1] : vector<96x96xf32> to vector<96xf32>
    %30 = vector.shape_cast %29 : vector<96xf32> to vector<96x1xf32>
    %31 = tpu.reciprocal %30 {approx = true} : vector<96x1xf32> -> vector<96x1xf32>
    %32 = vector.broadcast %31 : vector<96x1xf32> to vector<96x96xf32>
    %33 = arith.mulf %28, %32 : vector<96x96xf32>
    %cst_25 = arith.constant dense<0.000000e+00> : vector<96x48xf32>
    %34 = tpu.matmul %33, %15, %cst_25 {dimension_numbers = #tpu.dot_dimension_numbers<[1], [0], [0], [1], [0, 0, 1, 1], [], []>} : vector<96x96xf32>, vector<96x48xf32>, vector<96x48xf32> -> vector<96x48xf32>
    %c0_26 = arith.constant 0 : index
    %c0_27 = arith.constant 0 : index
    %35 = vector.load %arg4[%c0_26, %c0_27] : memref<8x96xf32, #tpu.memory_space<vmem>>, vector<8x96xf32>
    %cst_28 = arith.constant dense<0.000000e+00> : vector<8x48xf32>
    %36 = tpu.matmul %35, %34, %cst_28 {dimension_numbers = #tpu.dot_dimension_numbers<[1], [0], [0], [1], [0, 0, 1, 1], [], []>} : vector<8x96xf32>, vector<96x48xf32>, vector<8x48xf32> -> vector<8x48xf32>
    %c0_29 = arith.constant 0 : index
    %c0_30 = arith.constant 0 : index
    %37 = vector.load %arg21[%c0_29, %c0_30] : memref<8x48xf32, #tpu.memory_space<vmem>>, vector<8x48xf32>
    tpu.vector_store %arg21[%c0_29, %c0_30], %36 {strides = array<i32>} : memref<8x48xf32, #tpu.memory_space<vmem>>, vector<8x48xf32>,
    %c0_31 = arith.constant 0 : index
    %c0_32 = arith.constant 0 : index
    %38 = vector.load %arg13[%c0_31, %c0_32] : memref<48x192xf32, #tpu.memory_space<vmem>>, vector<48x192xf32>
    %cst_33 = arith.constant dense<0.000000e+00> : vector<96x192xf32>
    %39 = tpu.matmul %34, %38, %cst_33 {dimension_numbers = #tpu.dot_dimension_numbers<[1], [0], [0], [1], [0, 0, 1, 1], [], []>} : vector<96x48xf32>, vector<48x192xf32>, vector<96x192xf32> -> vector<96x192xf32>
    %40 = arith.addf %20, %39 : vector<96x192xf32>
    %41 = math.tanh %40 : vector<96x192xf32>
    %c0_34 = arith.constant 0 : index
    %c0_35 = arith.constant 0 : index
    %42 = vector.load %arg14[%c0_34, %c0_35] : memref<1x192xf32, #tpu.memory_space<vmem>>, vector<1x192xf32>
    %cst_36 = arith.constant dense<0.000000e+00> : vector<1x96xf32>
    %43 = tpu.matmul %42, %41, %cst_36 {dimension_numbers = #tpu.dot_dimension_numbers<[1], [1], [0], [0], [0, 0, 1, 0], [], []>} : vector<1x192xf32>, vector<96x192xf32>, vector<1x96xf32> -> vector<1x96xf32>
    %c0_37 = arith.constant 0 : index
    %c0_38 = arith.constant 0 : index
    %44 = vector.load %arg15[%c0_37, %c0_38] : memref<1x1xf32, #tpu.memory_space<vmem>>, vector<1x1xf32>
    %45 = vector.broadcast %44 : vector<1x1xf32> to vector<1x96xf32>
    %46 = arith.addf %43, %45 : vector<1x96xf32>
    %c0_39 = arith.constant 0 : index
    %c0_40 = arith.constant 0 : index
    %c0_41 = arith.constant 0 : index
    %47 = vector.load %arg2[%c0_39, %c0_40, %c0_41] : memref<1x1x96xf32, #tpu.memory_space<vmem>>, vector<1x1x96xf32>
    %48 = vector.shape_cast %47 : vector<1x1x96xf32> to vector<1x96xf32>
    %cst_42 = arith.constant 5.000000e-01 : f32
    %49 = vector.broadcast %cst_42 : f32 to vector<1x96xf32>
    %50 = arith.cmpf ogt, %48, %49 : vector<1x96xf32>
    %cst_43 = arith.constant -1.000000e+30 : f32
    %51 = vector.broadcast %cst_43 : f32 to vector<1x96xf32>
    %52 = arith.select %50, %46, %51 : vector<1x96xi1>, vector<1x96xf32>
    %cst_44 = arith.constant dense<0xFF800000> : vector<1xf32>
    %53 = vector.multi_reduction <maximumf>, %52, %cst_44 [1] : vector<1x96xf32> to vector<1xf32>
    %54 = vector.shape_cast %53 : vector<1xf32> to vector<1x1xf32>
    %55 = vector.broadcast %54 : vector<1x1xf32> to vector<1x96xf32>
    %56 = arith.subf %52, %55 : vector<1x96xf32>
    %cst_45 = arith.constant 5.000000e-01 : f32
    %57 = vector.broadcast %cst_45 : f32 to vector<1x96xf32>
    %58 = arith.cmpf ogt, %48, %57 : vector<1x96xf32>
    %59 = math.exp %56 : vector<1x96xf32>
    %cst_46 = arith.constant 0.000000e+00 : f32
    %60 = vector.broadcast %cst_46 : f32 to vector<1x96xf32>
    %61 = arith.select %58, %59, %60 : vector<1x96xi1>, vector<1x96xf32>
    %c0_47 = arith.constant 0 : index
    %c0_48 = arith.constant 0 : index
    %62 = vector.load %arg3[%c0_47, %c0_48] : memref<96x96xf32, #tpu.memory_space<vmem>>, vector<96x96xf32>
    %cst_49 = arith.constant -1.000000e+00 : f32
    %63 = vector.broadcast %cst_49 : f32 to vector<96x96xf32>
    %64 = arith.cmpf ogt, %62, %63 : vector<96x96xf32>
    %65 = arith.extui %64 : vector<96x96xi1> to vector<96x96xi32>
    %66 = arith.sitofp %65 : vector<96x96xi32> to vector<96x96xf32>
    %cst_50 = arith.constant dense<0.000000e+00> : vector<1x96xf32>
    %67 = tpu.matmul %61, %66, %cst_50 {dimension_numbers = #tpu.dot_dimension_numbers<[1], [0], [0], [1], [0, 0, 1, 1], [], []>} : vector<1x96xf32>, vector<96x96xf32>, vector<1x96xf32> -> vector<1x96xf32>
    %cst_51 = arith.constant 1.000000e-30 : f32
    %68 = vector.broadcast %cst_51 : f32 to vector<1x96xf32>
    %69 = arith.maximumf %67, %68 : vector<1x96xf32>
    %70 = arith.divf %61, %69 : vector<1x96xf32>
    %c0_52 = arith.constant 0 : index
    %c0_53 = arith.constant 0 : index
    %c0_54 = arith.constant 0 : index
    %71 = vector.load %arg20[%c0_52, %c0_53, %c0_54] : memref<1x1x96xf32, #tpu.memory_space<vmem>>, vector<1x1x96xf32>
    %72 = vector.shape_cast %71 : vector<1x1x96xf32> to vector<1x96xf32>
    %73 = vector.shape_cast %70 : vector<1x96xf32> to vector<1x1x96xf32>
    tpu.vector_store %arg20[%c0_52, %c0_53, %c0_54], %73 {strides = array<i32>} : memref<1x1x96xf32, #tpu.memory_space<vmem>>, vector<1x1x96xf32>,
    %c0_55 = arith.constant 0 : index
    %c0_56 = arith.constant 0 : index
    %74 = vector.load %arg16[%c0_55, %c0_56] : memref<48x96xf32, #tpu.memory_space<vmem>>, vector<48x96xf32>
    %cst_57 = arith.constant dense<0.000000e+00> : vector<8x96xf32>
    %75 = tpu.matmul %36, %74, %cst_57 {dimension_numbers = #tpu.dot_dimension_numbers<[1], [0], [0], [1], [0, 0, 1, 1], [], []>} : vector<8x48xf32>, vector<48x96xf32>, vector<8x96xf32> -> vector<8x96xf32>
    %c0_58 = arith.constant 0 : index
    %c0_59 = arith.constant 0 : index
    %76 = vector.load %arg17[%c0_58, %c0_59] : memref<1x96xf32, #tpu.memory_space<vmem>>, vector<1x96xf32>
    %77 = vector.broadcast %76 : vector<1x96xf32> to vector<8x96xf32>
    %78 = arith.addf %75, %77 : vector<8x96xf32>
    %79 = math.tanh %78 : vector<8x96xf32>
    %c0_60 = arith.constant 0 : index
    %c0_61 = arith.constant 0 : index
    %80 = vector.load %arg18[%c0_60, %c0_61] : memref<96x1xf32, #tpu.memory_space<vmem>>, vector<96x1xf32>
    %cst_62 = arith.constant dense<0.000000e+00> : vector<8x1xf32>
    %81 = tpu.matmul %79, %80, %cst_62 {dimension_numbers = #tpu.dot_dimension_numbers<[1], [0], [0], [1], [0, 0, 1, 1], [], []>} : vector<8x96xf32>, vector<96x1xf32>, vector<8x1xf32> -> vector<8x1xf32>
    %c0_63 = arith.constant 0 : index
    %c0_64 = arith.constant 0 : index
    %82 = vector.load %arg19[%c0_63, %c0_64] : memref<1x1xf32, #tpu.memory_space<vmem>>, vector<1x1xf32>
    %83 = vector.broadcast %82 : vector<1x1xf32> to vector<8x1xf32>
    %84 = arith.addf %81, %83 : vector<8x1xf32>
    %c0_65 = arith.constant 0 : index
    %c0_66 = arith.constant 0 : index
    %85 = vector.load %arg22[%c0_65, %c0_66] : memref<8x1xf32, #tpu.memory_space<vmem>>, vector<8x1xf32>
    tpu.vector_store %arg22[%c0_65, %c0_66], %84 {strides = array<i32>} : memref<8x1xf32, #tpu.memory_space<vmem>>, vector<8x1xf32>,
    return
  }
  func.func @transform_0(%arg0: i32) -> (i32, i32) {
    %c0_i32 = arith.constant 0 : i32
    %c0_i32_0 = arith.constant 0 : i32
    return %arg0, %c0_i32 : i32, i32
  }
  func.func @transform_1(%arg0: i32) -> (i32, i32, i32) {
    %c0_i32 = arith.constant 0 : i32
    %c0_i32_0 = arith.constant 0 : i32
    %c0_i32_1 = arith.constant 0 : i32
    return %arg0, %c0_i32, %c0_i32_0 : i32, i32, i32
  }
  func.func @transform_2(%arg0: i32) -> (i32, i32) {
    %c0_i32 = arith.constant 0 : i32
    %c0_i32_0 = arith.constant 0 : i32
    %c0_i32_1 = arith.constant 0 : i32
    return %c0_i32, %c0_i32_0 : i32, i32
  }
  func.func @transform_3(%arg0: i32) -> (i32, i32) {
    %c0_i32 = arith.constant 0 : i32
    %c0_i32_0 = arith.constant 0 : i32
    %c0_i32_1 = arith.constant 0 : i32
    return %c0_i32, %c0_i32_0 : i32, i32
  }
  func.func @transform_4(%arg0: i32) -> (i32, i32) {
    %c0_i32 = arith.constant 0 : i32
    %c0_i32_0 = arith.constant 0 : i32
    %c0_i32_1 = arith.constant 0 : i32
    return %c0_i32, %c0_i32_0 : i32, i32
  }
  func.func @transform_5(%arg0: i32) -> (i32, i32) {
    %c0_i32 = arith.constant 0 : i32
    %c0_i32_0 = arith.constant 0 : i32
    %c0_i32_1 = arith.constant 0 : i32
    return %c0_i32, %c0_i32_0 : i32, i32
  }
  func.func @transform_6(%arg0: i32) -> (i32, i32) {
    %c0_i32 = arith.constant 0 : i32
    %c0_i32_0 = arith.constant 0 : i32
    %c0_i32_1 = arith.constant 0 : i32
    return %c0_i32, %c0_i32_0 : i32, i32
  }
  func.func @transform_7(%arg0: i32) -> (i32, i32) {
    %c0_i32 = arith.constant 0 : i32
    %c0_i32_0 = arith.constant 0 : i32
    %c0_i32_1 = arith.constant 0 : i32
    return %c0_i32, %c0_i32_0 : i32, i32
  }
  func.func @transform_8(%arg0: i32) -> (i32, i32) {
    %c0_i32 = arith.constant 0 : i32
    %c0_i32_0 = arith.constant 0 : i32
    %c0_i32_1 = arith.constant 0 : i32
    return %c0_i32, %c0_i32_0 : i32, i32
  }
  func.func @transform_9(%arg0: i32) -> (i32, i32) {
    %c0_i32 = arith.constant 0 : i32
    %c0_i32_0 = arith.constant 0 : i32
    %c0_i32_1 = arith.constant 0 : i32
    return %c0_i32, %c0_i32_0 : i32, i32
  }
  func.func @transform_10(%arg0: i32) -> (i32, i32) {
    %c0_i32 = arith.constant 0 : i32
    %c0_i32_0 = arith.constant 0 : i32
    %c0_i32_1 = arith.constant 0 : i32
    return %c0_i32, %c0_i32_0 : i32, i32
  }
  func.func @transform_11(%arg0: i32) -> (i32, i32) {
    %c0_i32 = arith.constant 0 : i32
    %c0_i32_0 = arith.constant 0 : i32
    %c0_i32_1 = arith.constant 0 : i32
    return %c0_i32, %c0_i32_0 : i32, i32
  }
  func.func @transform_12(%arg0: i32) -> (i32, i32) {
    %c0_i32 = arith.constant 0 : i32
    %c0_i32_0 = arith.constant 0 : i32
    %c0_i32_1 = arith.constant 0 : i32
    return %c0_i32, %c0_i32_0 : i32, i32
  }
  func.func @transform_13(%arg0: i32) -> (i32, i32) {
    %c0_i32 = arith.constant 0 : i32
    %c0_i32_0 = arith.constant 0 : i32
    %c0_i32_1 = arith.constant 0 : i32
    return %c0_i32, %c0_i32_0 : i32, i32
  }
  func.func @transform_14(%arg0: i32) -> (i32, i32) {
    %c0_i32 = arith.constant 0 : i32
    %c0_i32_0 = arith.constant 0 : i32
    %c0_i32_1 = arith.constant 0 : i32
    return %c0_i32, %c0_i32_0 : i32, i32
  }
  func.func @transform_15(%arg0: i32) -> (i32, i32) {
    %c0_i32 = arith.constant 0 : i32
    %c0_i32_0 = arith.constant 0 : i32
    %c0_i32_1 = arith.constant 0 : i32
    return %c0_i32, %c0_i32_0 : i32, i32
  }
  func.func @transform_16(%arg0: i32) -> (i32, i32) {
    %c0_i32 = arith.constant 0 : i32
    %c0_i32_0 = arith.constant 0 : i32
    %c0_i32_1 = arith.constant 0 : i32
    return %c0_i32, %c0_i32_0 : i32, i32
  }
  func.func @transform_17(%arg0: i32) -> (i32, i32) {
    %c0_i32 = arith.constant 0 : i32
    %c0_i32_0 = arith.constant 0 : i32
    %c0_i32_1 = arith.constant 0 : i32
    return %c0_i32, %c0_i32_0 : i32, i32
  }
  func.func @transform_18(%arg0: i32) -> (i32, i32) {
    %c0_i32 = arith.constant 0 : i32
    %c0_i32_0 = arith.constant 0 : i32
    %c0_i32_1 = arith.constant 0 : i32
    return %c0_i32, %c0_i32_0 : i32, i32
  }
  func.func @transform_19(%arg0: i32) -> (i32, i32, i32) {
    %c0_i32 = arith.constant 0 : i32
    %c0_i32_0 = arith.constant 0 : i32
    %c0_i32_1 = arith.constant 0 : i32
    return %arg0, %c0_i32, %c0_i32_0 : i32, i32, i32
  }
  func.func @transform_20(%arg0: i32) -> (i32, i32) {
    %c0_i32 = arith.constant 0 : i32
    %c0_i32_0 = arith.constant 0 : i32
    return %arg0, %c0_i32 : i32, i32
  }
  func.func @transform_21(%arg0: i32) -> (i32, i32) {
    %c0_i32 = arith.constant 0 : i32
    %c0_i32_0 = arith.constant 0 : i32
    return %arg0, %c0_i32 : i32, i32
  }
}

</mosaic_0001>

<llo_original>
// kernel: _forward.1
$region0: #{_forward.1}
  #allocation0 [shape = 'u32[]', space=smem, size = 0x4, offset = 0x4, fixed_abs, tag = 'smem constant byte address 0x4 - core index']
  #allocation1 [shape = 'u32[144,128]{1,0:T(1,128)}', space=vmem, size = 0x12000, scoped, tag = 'internal scratch']
  #allocation2 [shape = 'f32[1,1]{1,0:T(1,128)S(1)}', space=vmem, size = 0x200, scoped, tag = 'scoped memory for _forward.1']
  #allocation3 [shape = 'f32[1,1]{1,0:T(1,128)S(1)}', space=vmem, size = 0x200, scoped, tag = 'scoped memory for _forward.1']
  %s0 = inlined_call_operand.vmem [shape: f32[96,10], index: 0, kind: input, shape index: {}]
  %s1 = inlined_call_operand.vmem [shape: f32[1,1,96], index: 1, kind: input, shape index: {}]
  %s2 = inlined_call_operand.vmem [shape: f32[96,96], index: 2, kind: input, shape index: {}]
  %s3 = inlined_call_operand.vmem [shape: f32[8,96], index: 3, kind: input, shape index: {}]
  %s4 = inlined_call_operand.vmem [shape: f32[10,48], index: 4, kind: input, shape index: {}]
  %s5 = inlined_call_operand.vmem [shape: f32[1,48], index: 5, kind: input, shape index: {}]
  %s6 = inlined_call_operand.vmem [shape: f32[10,48], index: 6, kind: input, shape index: {}]
  %s7 = inlined_call_operand.vmem [shape: f32[1,48], index: 7, kind: input, shape index: {}]
  %s8 = inlined_call_operand.vmem [shape: f32[10,48], index: 8, kind: input, shape index: {}]
  %s9 = inlined_call_operand.vmem [shape: f32[1,48], index: 9, kind: input, shape index: {}]
  %s10 = inlined_call_operand.vmem [shape: f32[10,192], index: 10, kind: input, shape index: {}]
  %s11 = inlined_call_operand.vmem [shape: f32[1,192], index: 11, kind: input, shape index: {}]
  %s12 = inlined_call_operand.vmem [shape: f32[48,192], index: 12, kind: input, shape index: {}]
  %s13 = inlined_call_operand.vmem [shape: f32[1,192], index: 13, kind: input, shape index: {}]
  %s14 = inlined_call_operand.<no memory space> [shape: f32[1,1], index: 14, kind: input, shape index: {}]
  %s15 = inlined_call_operand.vmem [shape: f32[48,96], index: 15, kind: input, shape index: {}]
  %s16 = inlined_call_operand.vmem [shape: f32[1,96], index: 16, kind: input, shape index: {}]
  %s17 = inlined_call_operand.vmem [shape: f32[96,1], index: 17, kind: input, shape index: {}]
  %s18 = inlined_call_operand.<no memory space> [shape: f32[1,1], index: 18, kind: input, shape index: {}]
  %s19 = inlined_call_operand.vmem [shape: f32[1,1,96], index: 19, kind: output, shape index: {0}]
  %s20 = inlined_call_operand.vmem [shape: f32[8,48], index: 20, kind: output, shape index: {1}]
  %s21 = inlined_call_operand.vmem [shape: f32[8,1], index: 21, kind: output, shape index: {2}]
  %22 = xla_tuple %s19, %s20, %s21
  %s23 = sld [smem:[#allocation0]]
  $region102: #{_forward.1} parent=0
    _
  %s25 = ssub.s32 1, %s23
  %s26 = scalar_select 0, %s25, %s23
  %v27 = vstv %s14
  %28 = vst [vmem:[#allocation2] sm:$0x1] %v27
  %v29 = vstv %s18
  %30 = vst [vmem:[#allocation3] sm:$0x1] %v29
  // Predicated region
  $region2: #{_forward.1} parent=0 // pred_check
    _
  $region3: #{_forward.1} parent=0 // pred_check_branch
    %32 = sbr.rel (0) target = $region5
  $region4: #{_forward.1} parent=0 // pred_region
    _
  $region5: #{_forward.1} parent=0 // pred_fallthru
    _
  // Predicated region
  $region6: #{_forward.1} parent=0 // pred_check
    _
  $region7: #{_forward.1} parent=0 // pred_check_branch
    %34 = sbr.rel (0) target = $region9
  $region8: #{_forward.1} parent=0 // pred_region
    _
  $region9: #{_forward.1} parent=0 // pred_fallthru
    _
  // Predicated region
  $region10: #{_forward.1} parent=0 // pred_check
    _
  $region11: #{_forward.1} parent=0 // pred_check_branch
    %36 = sbr.rel (0) target = $region13
  $region12: #{_forward.1} parent=0 // pred_region
    _
  $region13: #{_forward.1} parent=0 // pred_fallthru
    _
  // Predicated region
  $region14: #{_forward.1} parent=0 // pred_check
    _
  $region15: #{_forward.1} parent=0 // pred_check_branch
    %38 = sbr.rel (0) target = $region17
  $region16: #{_forward.1} parent=0 // pred_region
    _
  $region17: #{_forward.1} parent=0 // pred_fallthru
    _
  // Predicated region
  $region18: #{_forward.1} parent=0 // pred_check
    _
  $region19: #{_forward.1} parent=0 // pred_check_branch
    %40 = sbr.rel (0) target = $region21
  $region20: #{_forward.1} parent=0 // pred_region
    _
  $region21: #{_forward.1} parent=0 // pred_fallthru
    _
  // Predicated region
  $region22: #{_forward.1} parent=0 // pred_check
    _
  $region23: #{_forward.1} parent=0 // pred_check_branch
    %42 = sbr.rel (0) target = $region25
  $region24: #{_forward.1} parent=0 // pred_region
    _
  $region25: #{_forward.1} parent=0 // pred_fallthru
    _
  // Predicated region
  $region26: #{_forward.1} parent=0 // pred_check
    _
  $region27: #{_forward.1} parent=0 // pred_check_branch
    %44 = sbr.rel (0) target = $region29
  $region28: #{_forward.1} parent=0 // pred_region
    _
  $region29: #{_forward.1} parent=0 // pred_fallthru
    _
  // Predicated region
  $region30: #{_forward.1} parent=0 // pred_check
    _
  $region31: #{_forward.1} parent=0 // pred_check_branch
    %46 = sbr.rel (0) target = $region33
  $region32: #{_forward.1} parent=0 // pred_region
    _
  $region33: #{_forward.1} parent=0 // pred_fallthru
    _
  // Predicated region
  $region34: #{_forward.1} parent=0 // pred_check
    _
  $region35: #{_forward.1} parent=0 // pred_check_branch
    %48 = sbr.rel (0) target = $region37
  $region36: #{_forward.1} parent=0 // pred_region
    _
  $region37: #{_forward.1} parent=0 // pred_fallthru
    _
  // Predicated region
  $region38: #{_forward.1} parent=0 // pred_check
    _
  $region39: #{_forward.1} parent=0 // pred_check_branch
    %50 = sbr.rel (0) target = $region41
  $region40: #{_forward.1} parent=0 // pred_region
    _
  $region41: #{_forward.1} parent=0 // pred_fallthru
    _
  // Predicated region
  $region42: #{_forward.1} parent=0 // pred_check
    _
  $region43: #{_forward.1} parent=0 // pred_check_branch
    %52 = sbr.rel (0) target = $region45
  $region44: #{_forward.1} parent=0 // pred_region
    _
  $region45: #{_forward.1} parent=0 // pred_fallthru
    _
  // Predicated region
  $region46: #{_forward.1} parent=0 // pred_check
    _
  $region47: #{_forward.1} parent=0 // pred_check_branch
    %54 = sbr.rel (0) target = $region49
  $region48: #{_forward.1} parent=0 // pred_region
    _
  $region49: #{_forward.1} parent=0 // pred_fallthru
    _
  // Predicated region
  $region50: #{_forward.1} parent=0 // pred_check
    _
  $region51: #{_forward.1} parent=0 // pred_check_branch
    %56 = sbr.rel (0) target = $region53
  $region52: #{_forward.1} parent=0 // pred_region
    _
  $region53: #{_forward.1} parent=0 // pred_fallthru
    _
  // Predicated region
  $region54: #{_forward.1} parent=0 // pred_check
    _
  $region55: #{_forward.1} parent=0 // pred_check_branch
    %58 = sbr.rel (0) target = $region57
  $region56: #{_forward.1} parent=0 // pred_region
    _
  $region57: #{_forward.1} parent=0 // pred_fallthru
    _
  // Predicated region
  $region58: #{_forward.1} parent=0 // pred_check
    _
  $region59: #{_forward.1} parent=0 // pred_check_branch
    %60 = sbr.rel (0) target = $region61
  $region60: #{_forward.1} parent=0 // pred_region
    _
  $region61: #{_forward.1} parent=0 // pred_fallthru
    _
  // Predicated region
  $region62: #{_forward.1} parent=0 // pred_check
    _
  $region63: #{_forward.1} parent=0 // pred_check_branch
    %62 = sbr.rel (0) target = $region65
  $region64: #{_forward.1} parent=0 // pred_region
    _
  $region65: #{_forward.1} parent=0 // pred_fallthru
    _
  // Predicated region
  $region66: #{_forward.1} parent=0 // pred_check
    _
  $region67: #{_forward.1} parent=0 // pred_check_branch
    %64 = sbr.rel (0) target = $region69
  $region68: #{_forward.1} parent=0 // pred_region
    _
  $region69: #{_forward.1} parent=0 // pred_fallthru
    _
  // Predicated region
  $region70: #{_forward.1} parent=0 // pred_check
    _
  $region71: #{_forward.1} parent=0 // pred_check_branch
    %66 = sbr.rel (0) target = $region73
  $region72: #{_forward.1} parent=0 // pred_region
    _
  $region73: #{_forward.1} parent=0 // pred_fallthru
    _
  // Predicated region
  $region74: #{_forward.1} parent=0 // pred_check
    _
  $region75: #{_forward.1} parent=0 // pred_check_branch
    %68 = sbr.rel (0) target = $region77
  $region76: #{_forward.1} parent=0 // pred_region
    _
  $region77: #{_forward.1} parent=0 // pred_fallthru
    _
  %v69 = vld [vmem:[%s0] sm:$0xff]
  %v70 = vld [vmem:[%s0 + $0x8] sm:$0xff]
  %v71 = vld [vmem:[%s0 + $0x10] sm:$0xff]
  %v72 = vld [vmem:[%s0 + $0x18] sm:$0xff]
  %v73 = vld [vmem:[%s0 + $0x20] sm:$0xff]
  %v74 = vld [vmem:[%s0 + $0x28] sm:$0xff]
  %v75 = vld [vmem:[%s0 + $0x30] sm:$0xff]
  %v76 = vld [vmem:[%s0 + $0x38] sm:$0xff]
  %v77 = vld [vmem:[%s0 + $0x40] sm:$0xff]
  %v78 = vld [vmem:[%s0 + $0x48] sm:$0xff]
  %v79 = vld [vmem:[%s0 + $0x50] sm:$0xff]
  %v80 = vld [vmem:[%s0 + $0x58] sm:$0xff]
  %v81 = vld [vmem:[%s4] sm:$0xff]
  %v82 = vld [vmem:[%s4 + $0x8] sm:$0x3]
  %v83 = vld [vmem:[%s5] sm:$0x1]
  %v85 = vlaneseq
  %v86 = vshrl.u32 %v85, 7
  %v87 = vsub.s32 0, %v86
  %v88 = vrot.slane %v83, %v87
  %vm90 = vcmask 80896
  %v92 = vsel %vm90, %v69, 0
  %v95 = vsel %vm90, %v70, 0
  %v98 = vsel %vm90, %v71, 0
  %v101 = vsel %vm90, %v72, 0
  %v104 = vsel %vm90, %v73, 0
  %v107 = vsel %vm90, %v74, 0
  %v110 = vsel %vm90, %v75, 0
  %v113 = vsel %vm90, %v76, 0
  %v116 = vsel %vm90, %v77, 0
  %v119 = vsel %vm90, %v78, 0
  %v122 = vsel %vm90, %v79, 0
  %v125 = vsel %vm90, %v80, 0
  %vm127 = vcmask 1041408
  %v129 = vsel %vm127, %v82, 0
  %131 = vmatprep.subr.mxu0 0.0
  %132 = vmatpush1.msra.mxu0 0.0
  %133 = vmatprep.subr.mxu0 0.0
  %134 = vmatpush1.msra.mxu0 0.0
  %135 = vmatprep.subr.mxu0 0.0
  %136 = vmatpush1.msra.mxu0 0.0
  %137 = vmatprep.subr.mxu0 0.0
  %138 = vmatpush1.msra.mxu0 0.0
  %139 = vmatprep.subr.mxu0 0.0
  %140 = vmatpush1.msra.mxu0 0.0
  %141 = vmatprep.subr.mxu0 0.0
  %142 = vmatpush1.msra.mxu0 0.0
  %143 = vmatprep.subr.mxu0 0.0
  %144 = vmatpush1.msra.mxu0 0.0
  %145 = vmatprep.subr.mxu0 0.0
  %146 = vmatpush1.msra.mxu0 0.0
  %147 = vmatprep.subr.mxu0 0.0
  %148 = vmatpush1.msra.mxu0 0.0
  %149 = vmatprep.subr.mxu0 0.0
  %150 = vmatpush1.msra.mxu0 0.0
  %151 = vmatprep.subr.mxu0 0.0
  %152 = vmatpush1.msra.mxu0 0.0
  %153 = vmatprep.subr.mxu0 0.0
  %154 = vmatpush1.msra.mxu0 0.0
  %155 = vmatprep.subr.mxu0 0.0
  %156 = vmatpush1.msra.mxu0 0.0
  %157 = vmatprep.subr.mxu0 0.0
  %158 = vmatpush1.msra.mxu0 0.0
  %159 = vmatprep.subr.mxu0 0.0
  %160 = vmatpush1.msra.mxu0 %v129
  %161 = vmatprep.subr.mxu0 0.0
  %162 = vmatpush1.msra.mxu0 %v81
  %163 = vmatprep.subr.mxu0 0.0
  %164 = vmatpush2.msra.mxu0 0.0
  %165 = vmatprep.subr.mxu0 0.0
  %166 = vmatpush2.msra.mxu0 0.0
  %167 = vmatprep.subr.mxu0 0.0
  %168 = vmatpush2.msra.mxu0 0.0
  %169 = vmatprep.subr.mxu0 0.0
  %170 = vmatpush2.msra.mxu0 0.0
  %171 = vmatprep.subr.mxu0 0.0
  %172 = vmatpush2.msra.mxu0 0.0
  %173 = vmatprep.subr.mxu0 0.0
  %174 = vmatpush2.msra.mxu0 0.0
  %175 = vmatprep.subr.mxu0 0.0
  %176 = vmatpush2.msra.mxu0 0.0
  %177 = vmatprep.subr.mxu0 0.0
  %178 = vmatpush2.msra.mxu0 0.0
  %179 = vmatprep.subr.mxu0 0.0
  %180 = vmatpush2.msra.mxu0 0.0
  %181 = vmatprep.subr.mxu0 0.0
  %182 = vmatpush2.msra.mxu0 0.0
  %183 = vmatprep.subr.mxu0 0.0
  %184 = vmatpush2.msra.mxu0 0.0
  %185 = vmatprep.subr.mxu0 0.0
  %186 = vmatpush2.msra.mxu0 0.0
  %187 = vmatprep.subr.mxu0 0.0
  %188 = vmatpush2.msra.mxu0 0.0
  %189 = vmatprep.subr.mxu0 0.0
  %190 = vmatpush2.msra.mxu0 0.0
  %191 = vmatprep.subr.mxu0 0.0
  %192 = vmatpush2.msra.mxu0 0.0
  %193 = vmatprep.subr.mxu0 0.0
  %194 = vmatpush2.msra.mxu0 0.0
  %195 = vmatprep.mubr.f32.mxu0 0.0
  %196 = vmatmul.mubr.f32.gmra.mxu0 %v92
  %v197 = vpop.f32.mrf.mxu0
  %v198 = vadd.f32 %v88, %v197
  %v199 = vpop.f32.mrf.mxu0
  %200 = vmatprep.mubr.f32.mxu0 0.0
  %201 = vmatmul.mubr.f32.gmra.mxu0 %v95
  %v202 = vpop.f32.mrf.mxu0
  %v203 = vadd.f32 %v88, %v202
  %v204 = vpop.f32.mrf.mxu0
  %205 = vmatprep.mubr.f32.mxu0 0.0
  %206 = vmatmul.mubr.f32.gmra.mxu0 %v98
  %v207 = vpop.f32.mrf.mxu0
  %v208 = vadd.f32 %v88, %v207
  %v209 = vpop.f32.mrf.mxu0
  %210 = vmatprep.mubr.f32.mxu0 0.0
  %211 = vmatmul.mubr.f32.gmra.mxu0 %v101
  %v212 = vpop.f32.mrf.mxu0
  %v213 = vadd.f32 %v88, %v212
  %v214 = vpop.f32.mrf.mxu0
  %215 = vmatprep.mubr.f32.mxu0 0.0
  %216 = vmatmul.mubr.f32.gmra.mxu0 %v104
  %v217 = vpop.f32.mrf.mxu0
  %v218 = vadd.f32 %v88, %v217
  %v219 = vpop.f32.mrf.mxu0
  %220 = vmatprep.mubr.f32.mxu0 0.0
  %221 = vmatmul.mubr.f32.gmra.mxu0 %v107
  %v222 = vpop.f32.mrf.mxu0
  %v223 = vadd.f32 %v88, %v222
  %v224 = vpop.f32.mrf.mxu0
  %225 = vmatprep.mubr.f32.mxu0 0.0
  %226 = vmatmul.mubr.f32.gmra.mxu0 %v110
  %v227 = vpop.f32.mrf.mxu0
  %v228 = vadd.f32 %v88, %v227
  %v229 = vpop.f32.mrf.mxu0
  %230 = vmatprep.mubr.f32.mxu0 0.0
  %231 = vmatmul.mubr.f32.gmra.mxu0 %v113
  %v232 = vpop.f32.mrf.mxu0
  %v233 = vadd.f32 %v88, %v232
  %v234 = vpop.f32.mrf.mxu0
  %235 = vmatprep.mubr.f32.mxu0 0.0
  %236 = vmatmul.mubr.f32.gmra.mxu0 %v116
  %v237 = vpop.f32.mrf.mxu0
  %v238 = vadd.f32 %v88, %v237
  %v239 = vpop.f32.mrf.mxu0
  %240 = vmatprep.mubr.f32.mxu0 0.0
  %241 = vmatmul.mubr.f32.gmra.mxu0 %v119
  %v242 = vpop.f32.mrf.mxu0
  %v243 = vadd.f32 %v88, %v242
  %v244 = vpop.f32.mrf.mxu0
  %245 = vmatprep.mubr.f32.mxu0 0.0
  %246 = vmatmul.mubr.f32.gmra.mxu0 %v122
  %v247 = vpop.f32.mrf.mxu0
  %v248 = vadd.f32 %v88, %v247
  %v249 = vpop.f32.mrf.mxu0
  %250 = vmatprep.mubr.f32.mxu0 0.0
  %251 = vmatmul.mubr.f32.gmra.mxu0 %v125
  %v252 = vpop.f32.mrf.mxu0
  %v253 = vadd.f32 %v88, %v252
  %v254 = vpop.f32.mrf.mxu0
  %255 = vdwg.mxu0
  %v256 = vld [vmem:[%s6] sm:$0xff]
  %v257 = vld [vmem:[%s6 + $0x8] sm:$0x3]
  %v258 = vld [vmem:[%s7] sm:$0x1]
  %v260 = vlaneseq
  %v261 = vshrl.u32 %v260, 7
  %v262 = vsub.s32 0, %v261
  %v263 = vrot.slane %v258, %v262
  %v266 = vsel %vm127, %v257, 0
  %268 = vmatprep.subr.mxu0 0.0
  %269 = vmatpush1.msra.mxu0 0.0
  %270 = vmatprep.subr.mxu0 0.0
  %271 = vmatpush1.msra.mxu0 0.0
  %272 = vmatprep.subr.mxu0 0.0
  %273 = vmatpush1.msra.mxu0 0.0
  %274 = vmatprep.subr.mxu0 0.0
  %275 = vmatpush1.msra.mxu0 0.0
  %276 = vmatprep.subr.mxu0 0.0
  %277 = vmatpush1.msra.mxu0 0.0
  %278 = vmatprep.subr.mxu0 0.0
  %279 = vmatpush1.msra.mxu0 0.0
  %280 = vmatprep.subr.mxu0 0.0
  %281 = vmatpush1.msra.mxu0 0.0
  %282 = vmatprep.subr.mxu0 0.0
  %283 = vmatpush1.msra.mxu0 0.0
  %284 = vmatprep.subr.mxu0 0.0
  %285 = vmatpush1.msra.mxu0 0.0
  %286 = vmatprep.subr.mxu0 0.0
  %287 = vmatpush1.msra.mxu0 0.0
  %288 = vmatprep.subr.mxu0 0.0
  %289 = vmatpush1.msra.mxu0 0.0
  %290 = vmatprep.subr.mxu0 0.0
  %291 = vmatpush1.msra.mxu0 0.0
  %292 = vmatprep.subr.mxu0 0.0
  %293 = vmatpush1.msra.mxu0 0.0
  %294 = vmatprep.subr.mxu0 0.0
  %295 = vmatpush1.msra.mxu0 0.0
  %296 = vmatprep.subr.mxu0 0.0
  %297 = vmatpush1.msra.mxu0 %v266
  %298 = vmatprep.subr.mxu0 0.0
  %299 = vmatpush1.msra.mxu0 %v256
  %300 = vmatprep.subr.mxu0 0.0
  %301 = vmatpush2.msra.mxu0 0.0
  %302 = vmatprep.subr.mxu0 0.0
  %303 = vmatpush2.msra.mxu0 0.0
  %304 = vmatprep.subr.mxu0 0.0
  %305 = vmatpush2.msra.mxu0 0.0
  %306 = vmatprep.subr.mxu0 0.0
  %307 = vmatpush2.msra.mxu0 0.0
  %308 = vmatprep.subr.mxu0 0.0
  %309 = vmatpush2.msra.mxu0 0.0
  %310 = vmatprep.subr.mxu0 0.0
  %311 = vmatpush2.msra.mxu0 0.0
  %312 = vmatprep.subr.mxu0 0.0
  %313 = vmatpush2.msra.mxu0 0.0
  %314 = vmatprep.subr.mxu0 0.0
  %315 = vmatpush2.msra.mxu0 0.0
  %316 = vmatprep.subr.mxu0 0.0
  %317 = vmatpush2.msra.mxu0 0.0
  %318 = vmatprep.subr.mxu0 0.0
  %319 = vmatpush2.msra.mxu0 0.0
  %320 = vmatprep.subr.mxu0 0.0
  %321 = vmatpush2.msra.mxu0 0.0
  %322 = vmatprep.subr.mxu0 0.0
  %323 = vmatpush2.msra.mxu0 0.0
  %324 = vmatprep.subr.mxu0 0.0
  %325 = vmatpush2.msra.mxu0 0.0
  %326 = vmatprep.subr.mxu0 0.0
  %327 = vmatpush2.msra.mxu0 0.0
  %328 = vmatprep.subr.mxu0 0.0
  %329 = vmatpush2.msra.mxu0 0.0
  %330 = vmatprep.subr.mxu0 0.0
  %331 = vmatpush2.msra.mxu0 0.0
  %332 = vmatprep.mubr.f32.mxu0 0.0
  %333 = vmatmul.mubr.f32.gmra.mxu0 %v92
  %v334 = vpop.f32.mrf.mxu0
  %v335 = vadd.f32 %v263, %v334
  %v336 = vpop.f32.mrf.mxu0
  %337 = vmatprep.mubr.f32.mxu0 0.0
  %338 = vmatmul.mubr.f32.gmra.mxu0 %v95
  %v339 = vpop.f32.mrf.mxu0
  %v340 = vadd.f32 %v263, %v339
  %v341 = vpop.f32.mrf.mxu0
  %342 = vmatprep.mubr.f32.mxu0 0.0
  %343 = vmatmul.mubr.f32.gmra.mxu0 %v98
  %v344 = vpop.f32.mrf.mxu0
  %v345 = vadd.f32 %v263, %v344
  %v346 = vpop.f32.mrf.mxu0
  %347 = vmatprep.mubr.f32.mxu0 0.0
  %348 = vmatmul.mubr.f32.gmra.mxu0 %v101
  %v349 = vpop.f32.mrf.mxu0
  %v350 = vadd.f32 %v263, %v349
  %v351 = vpop.f32.mrf.mxu0
  %352 = vmatprep.mubr.f32.mxu0 0.0
  %353 = vmatmul.mubr.f32.gmra.mxu0 %v104
  %v354 = vpop.f32.mrf.mxu0
  %v355 = vadd.f32 %v263, %v354
  %v356 = vpop.f32.mrf.mxu0
  %357 = vmatprep.mubr.f32.mxu0 0.0
  %358 = vmatmul.mubr.f32.gmra.mxu0 %v107
  %v359 = vpop.f32.mrf.mxu0
  %v360 = vadd.f32 %v263, %v359
  %v361 = vpop.f32.mrf.mxu0
  %362 = vmatprep.mubr.f32.mxu0 0.0
  %363 = vmatmul.mubr.f32.gmra.mxu0 %v110
  %v364 = vpop.f32.mrf.mxu0
  %v365 = vadd.f32 %v263, %v364
  %v366 = vpop.f32.mrf.mxu0
  %367 = vmatprep.mubr.f32.mxu0 0.0
  %368 = vmatmul.mubr.f32.gmra.mxu0 %v113
  %v369 = vpop.f32.mrf.mxu0
  %v370 = vadd.f32 %v263, %v369
  %v371 = vpop.f32.mrf.mxu0
  %372 = vmatprep.mubr.f32.mxu0 0.0
  %373 = vmatmul.mubr.f32.gmra.mxu0 %v116
  %v374 = vpop.f32.mrf.mxu0
  %v375 = vadd.f32 %v263, %v374
  %v376 = vpop.f32.mrf.mxu0
  %377 = vmatprep.mubr.f32.mxu0 0.0
  %378 = vmatmul.mubr.f32.gmra.mxu0 %v119
  %v379 = vpop.f32.mrf.mxu0
  %v380 = vadd.f32 %v263, %v379
  %v381 = vpop.f32.mrf.mxu0
  %382 = vmatprep.mubr.f32.mxu0 0.0
  %383 = vmatmul.mubr.f32.gmra.mxu0 %v122
  %v384 = vpop.f32.mrf.mxu0
  %v385 = vadd.f32 %v263, %v384
  %v386 = vpop.f32.mrf.mxu0
  %387 = vmatprep.mubr.f32.mxu0 0.0
  %388 = vmatmul.mubr.f32.gmra.mxu0 %v125
  %v389 = vpop.f32.mrf.mxu0
  %v390 = vadd.f32 %v263, %v389
  %v391 = vpop.f32.mrf.mxu0
  %392 = vdwg.mxu0
  %v393 = vld [vmem:[%s8] sm:$0xff]
  %v394 = vld [vmem:[%s8 + $0x8] sm:$0x3]
  %v395 = vld [vmem:[%s9] sm:$0x1]
  %v397 = vlaneseq
  %v398 = vshrl.u32 %v397, 7
  %v399 = vsub.s32 0, %v398
  %v400 = vrot.slane %v395, %v399
  %v403 = vsel %vm127, %v394, 0
  %405 = vmatprep.subr.mxu0 0.0
  %406 = vmatpush1.msra.mxu0 0.0
  %407 = vmatprep.subr.mxu0 0.0
  %408 = vmatpush1.msra.mxu0 0.0
  %409 = vmatprep.subr.mxu0 0.0
  %410 = vmatpush1.msra.mxu0 0.0
  %411 = vmatprep.subr.mxu0 0.0
  %412 = vmatpush1.msra.mxu0 0.0
  %413 = vmatprep.subr.mxu0 0.0
  %414 = vmatpush1.msra.mxu0 0.0
  %415 = vmatprep.subr.mxu0 0.0
  %416 = vmatpush1.msra.mxu0 0.0
  %417 = vmatprep.subr.mxu0 0.0
  %418 = vmatpush1.msra.mxu0 0.0
  %419 = vmatprep.subr.mxu0 0.0
  %420 = vmatpush1.msra.mxu0 0.0
  %421 = vmatprep.subr.mxu0 0.0
  %422 = vmatpush1.msra.mxu0 0.0
  %423 = vmatprep.subr.mxu0 0.0
  %424 = vmatpush1.msra.mxu0 0.0
  %425 = vmatprep.subr.mxu0 0.0
  %426 = vmatpush1.msra.mxu0 0.0
  %427 = vmatprep.subr.mxu0 0.0
  %428 = vmatpush1.msra.mxu0 0.0
  %429 = vmatprep.subr.mxu0 0.0
  %430 = vmatpush1.msra.mxu0 0.0
  %431 = vmatprep.subr.mxu0 0.0
  %432 = vmatpush1.msra.mxu0 0.0
  %433 = vmatprep.subr.mxu0 0.0
  %434 = vmatpush1.msra.mxu0 %v403
  %435 = vmatprep.subr.mxu0 0.0
  %436 = vmatpush1.msra.mxu0 %v393
  %437 = vmatprep.subr.mxu0 0.0
  %438 = vmatpush2.msra.mxu0 0.0
  %439 = vmatprep.subr.mxu0 0.0
  %440 = vmatpush2.msra.mxu0 0.0
  %441 = vmatprep.subr.mxu0 0.0
  %442 = vmatpush2.msra.mxu0 0.0
  %443 = vmatprep.subr.mxu0 0.0
  %444 = vmatpush2.msra.mxu0 0.0
  %445 = vmatprep.subr.mxu0 0.0
  %446 = vmatpush2.msra.mxu0 0.0
  %447 = vmatprep.subr.mxu0 0.0
  %448 = vmatpush2.msra.mxu0 0.0
  %449 = vmatprep.subr.mxu0 0.0
  %450 = vmatpush2.msra.mxu0 0.0
  %451 = vmatprep.subr.mxu0 0.0
  %452 = vmatpush2.msra.mxu0 0.0
  %453 = vmatprep.subr.mxu0 0.0
  %454 = vmatpush2.msra.mxu0 0.0
  %455 = vmatprep.subr.mxu0 0.0
  %456 = vmatpush2.msra.mxu0 0.0
  %457 = vmatprep.subr.mxu0 0.0
  %458 = vmatpush2.msra.mxu0 0.0
  %459 = vmatprep.subr.mxu0 0.0
  %460 = vmatpush2.msra.mxu0 0.0
  %461 = vmatprep.subr.mxu0 0.0
  %462 = vmatpush2.msra.mxu0 0.0
  %463 = vmatprep.subr.mxu0 0.0
  %464 = vmatpush2.msra.mxu0 0.0
  %465 = vmatprep.subr.mxu0 0.0
  %466 = vmatpush2.msra.mxu0 0.0
  %467 = vmatprep.subr.mxu0 0.0
  %468 = vmatpush2.msra.mxu0 0.0
  %469 = vmatprep.mubr.f32.mxu0 0.0
  %470 = vmatmul.mubr.f32.gmra.mxu0 %v92
  %v471 = vpop.f32.mrf.mxu0
  %v472 = vadd.f32 %v400, %v471
  %v473 = vpop.f32.mrf.mxu0
  %474 = vmatprep.mubr.f32.mxu0 0.0
  %475 = vmatmul.mubr.f32.gmra.mxu0 %v95
  %v476 = vpop.f32.mrf.mxu0
  %v477 = vadd.f32 %v400, %v476
  %v478 = vpop.f32.mrf.mxu0
  %479 = vmatprep.mubr.f32.mxu0 0.0
  %480 = vmatmul.mubr.f32.gmra.mxu0 %v98
  %v481 = vpop.f32.mrf.mxu0
  %v482 = vadd.f32 %v400, %v481
  %v483 = vpop.f32.mrf.mxu0
  %484 = vmatprep.mubr.f32.mxu0 0.0
  %485 = vmatmul.mubr.f32.gmra.mxu0 %v101
  %v486 = vpop.f32.mrf.mxu0
  %v487 = vadd.f32 %v400, %v486
  %v488 = vpop.f32.mrf.mxu0
  %489 = vmatprep.mubr.f32.mxu0 0.0
  %490 = vmatmul.mubr.f32.gmra.mxu0 %v104
  %v491 = vpop.f32.mrf.mxu0
  %v492 = vadd.f32 %v400, %v491
  %v493 = vpop.f32.mrf.mxu0
  %494 = vmatprep.mubr.f32.mxu0 0.0
  %495 = vmatmul.mubr.f32.gmra.mxu0 %v107
  %v496 = vpop.f32.mrf.mxu0
  %v497 = vadd.f32 %v400, %v496
  %v498 = vpop.f32.mrf.mxu0
  %499 = vmatprep.mubr.f32.mxu0 0.0
  %500 = vmatmul.mubr.f32.gmra.mxu0 %v110
  %v501 = vpop.f32.mrf.mxu0
  %v502 = vadd.f32 %v400, %v501
  %v503 = vpop.f32.mrf.mxu0
  %504 = vmatprep.mubr.f32.mxu0 0.0
  %505 = vmatmul.mubr.f32.gmra.mxu0 %v113
  %v506 = vpop.f32.mrf.mxu0
  %v507 = vadd.f32 %v400, %v506
  %v508 = vpop.f32.mrf.mxu0
  %509 = vmatprep.mubr.f32.mxu0 0.0
  %510 = vmatmul.mubr.f32.gmra.mxu0 %v116
  %v511 = vpop.f32.mrf.mxu0
  %v512 = vadd.f32 %v400, %v511
  %v513 = vpop.f32.mrf.mxu0
  %514 = vmatprep.mubr.f32.mxu0 0.0
  %515 = vmatmul.mubr.f32.gmra.mxu0 %v119
  %v516 = vpop.f32.mrf.mxu0
  %v517 = vadd.f32 %v400, %v516
  %v518 = vpop.f32.mrf.mxu0
  %519 = vmatprep.mubr.f32.mxu0 0.0
  %520 = vmatmul.mubr.f32.gmra.mxu0 %v122
  %v521 = vpop.f32.mrf.mxu0
  %v522 = vadd.f32 %v400, %v521
  %v523 = vpop.f32.mrf.mxu0
  %524 = vmatprep.mubr.f32.mxu0 0.0
  %525 = vmatmul.mubr.f32.gmra.mxu0 %v125
  %v526 = vpop.f32.mrf.mxu0
  %v527 = vadd.f32 %v400, %v526
  %v528 = vpop.f32.mrf.mxu0
  %529 = vdwg.mxu0
  %v530 = vld [vmem:[%s10] sm:$0xff]
  %v531 = vld [vmem:[%s10 + $0x8] sm:$0xff]
  %v532 = vld [vmem:[%s10 + $0x10] sm:$0x3]
  %v533 = vld [vmem:[%s10 + $0x18] sm:$0x3]
  %v534 = vld [vmem:[%s11] sm:$0x3]
  %v536 = vlaneseq
  %v537 = vshrl.u32 %v536, 7
  %v538 = vsub.s32 0, %v537
  %v539 = vrot.slane %v534, %v538
  %v540 = vlaneseq
  %v541 = vshrl.u32 %v540, 7
  %v542 = vsub.s32 1, %v541
  %v543 = vrot.slane %v534, %v542
  %v547 = vsel %vm127, %v532, 0
  %v550 = vsel %vm127, %v533, 0
  %552 = vmatprep.subr.mxu0 0.0
  %553 = vmatpush1.msra.mxu0 0.0
  %554 = vmatprep.subr.mxu0 0.0
  %555 = vmatpush1.msra.mxu0 0.0
  %556 = vmatprep.subr.mxu0 0.0
  %557 = vmatpush1.msra.mxu0 0.0
  %558 = vmatprep.subr.mxu0 0.0
  %559 = vmatpush1.msra.mxu0 0.0
  %560 = vmatprep.subr.mxu0 0.0
  %561 = vmatpush1.msra.mxu0 0.0
  %562 = vmatprep.subr.mxu0 0.0
  %563 = vmatpush1.msra.mxu0 0.0
  %564 = vmatprep.subr.mxu0 0.0
  %565 = vmatpush1.msra.mxu0 0.0
  %566 = vmatprep.subr.mxu0 0.0
  %567 = vmatpush1.msra.mxu0 0.0
  %568 = vmatprep.subr.mxu0 0.0
  %569 = vmatpush1.msra.mxu0 0.0
  %570 = vmatprep.subr.mxu0 0.0
  %571 = vmatpush1.msra.mxu0 0.0
  %572 = vmatprep.subr.mxu0 0.0
  %573 = vmatpush1.msra.mxu0 0.0
  %574 = vmatprep.subr.mxu0 0.0
  %575 = vmatpush1.msra.mxu0 0.0
  %576 = vmatprep.subr.mxu0 0.0
  %577 = vmatpush1.msra.mxu0 0.0
  %578 = vmatprep.subr.mxu0 0.0
  %579 = vmatpush1.msra.mxu0 0.0
  %580 = vmatprep.subr.mxu0 %v550
  %581 = vmatpush1.msra.mxu0 %v547
  %582 = vmatprep.subr.mxu0 %v531
  %583 = vmatpush1.msra.mxu0 %v530
  %584 = vmatprep.subr.mxu0 0.0
  %585 = vmatpush2.msra.mxu0 0.0
  %586 = vmatprep.subr.mxu0 0.0
  %587 = vmatpush2.msra.mxu0 0.0
  %588 = vmatprep.subr.mxu0 0.0
  %589 = vmatpush2.msra.mxu0 0.0
  %590 = vmatprep.subr.mxu0 0.0
  %591 = vmatpush2.msra.mxu0 0.0
  %592 = vmatprep.subr.mxu0 0.0
  %593 = vmatpush2.msra.mxu0 0.0
  %594 = vmatprep.subr.mxu0 0.0
  %595 = vmatpush2.msra.mxu0 0.0
  %596 = vmatprep.subr.mxu0 0.0
  %597 = vmatpush2.msra.mxu0 0.0
  %598 = vmatprep.subr.mxu0 0.0
  %599 = vmatpush2.msra.mxu0 0.0
  %600 = vmatprep.subr.mxu0 0.0
  %601 = vmatpush2.msra.mxu0 0.0
  %602 = vmatprep.subr.mxu0 0.0
  %603 = vmatpush2.msra.mxu0 0.0
  %604 = vmatprep.subr.mxu0 0.0
  %605 = vmatpush2.msra.mxu0 0.0
  %606 = vmatprep.subr.mxu0 0.0
  %607 = vmatpush2.msra.mxu0 0.0
  %608 = vmatprep.subr.mxu0 0.0
  %609 = vmatpush2.msra.mxu0 0.0
  %610 = vmatprep.subr.mxu0 0.0
  %611 = vmatpush2.msra.mxu0 0.0
  %612 = vmatprep.subr.mxu0 0.0
  %613 = vmatpush2.msra.mxu0 0.0
  %614 = vmatprep.subr.mxu0 0.0
  %615 = vmatpush2.msra.mxu0 0.0
  %616 = vmatprep.mubr.f32.mxu0 0.0
  %617 = vmatmul.mubr.f32.gmra.mxu0 %v92
  %v618 = vpop.f32.mrf.mxu0
  %v619 = vadd.f32 %v539, %v618
  %v620 = vpop.f32.mrf.mxu0
  %v621 = vadd.f32 %v543, %v620
  %622 = vmatprep.mubr.f32.mxu0 0.0
  %623 = vmatmul.mubr.f32.gmra.mxu0 %v95
  %v624 = vpop.f32.mrf.mxu0
  %v625 = vadd.f32 %v539, %v624
  %v626 = vpop.f32.mrf.mxu0
  %v627 = vadd.f32 %v543, %v626
  %628 = vmatprep.mubr.f32.mxu0 0.0
  %629 = vmatmul.mubr.f32.gmra.mxu0 %v98
  %v630 = vpop.f32.mrf.mxu0
  %v631 = vadd.f32 %v539, %v630
  %v632 = vpop.f32.mrf.mxu0
  %v633 = vadd.f32 %v543, %v632
  %634 = vmatprep.mubr.f32.mxu0 0.0
  %635 = vmatmul.mubr.f32.gmra.mxu0 %v101
  %v636 = vpop.f32.mrf.mxu0
  %v637 = vadd.f32 %v539, %v636
  %v638 = vpop.f32.mrf.mxu0
  %v639 = vadd.f32 %v543, %v638
  %640 = vmatprep.mubr.f32.mxu0 0.0
  %641 = vmatmul.mubr.f32.gmra.mxu0 %v104
  %v642 = vpop.f32.mrf.mxu0
  %v643 = vadd.f32 %v539, %v642
  %v644 = vpop.f32.mrf.mxu0
  %v645 = vadd.f32 %v543, %v644
  %646 = vmatprep.mubr.f32.mxu0 0.0
  %647 = vmatmul.mubr.f32.gmra.mxu0 %v107
  %v648 = vpop.f32.mrf.mxu0
  %v649 = vadd.f32 %v539, %v648
  %v650 = vpop.f32.mrf.mxu0
  %v651 = vadd.f32 %v543, %v650
  %652 = vmatprep.mubr.f32.mxu0 0.0
  %653 = vmatmul.mubr.f32.gmra.mxu0 %v110
  %v654 = vpop.f32.mrf.mxu0
  %v655 = vadd.f32 %v539, %v654
  %v656 = vpop.f32.mrf.mxu0
  %v657 = vadd.f32 %v543, %v656
  %658 = vmatprep.mubr.f32.mxu0 0.0
  %659 = vmatmul.mubr.f32.gmra.mxu0 %v113
  %v660 = vpop.f32.mrf.mxu0
  %v661 = vadd.f32 %v539, %v660
  %v662 = vpop.f32.mrf.mxu0
  %v663 = vadd.f32 %v543, %v662
  %664 = vmatprep.mubr.f32.mxu0 0.0
  %665 = vmatmul.mubr.f32.gmra.mxu0 %v116
  %v666 = vpop.f32.mrf.mxu0
  %v667 = vadd.f32 %v539, %v666
  %v668 = vpop.f32.mrf.mxu0
  %v669 = vadd.f32 %v543, %v668
  %670 = vmatprep.mubr.f32.mxu0 0.0
  %671 = vmatmul.mubr.f32.gmra.mxu0 %v119
  %v672 = vpop.f32.mrf.mxu0
  %v673 = vadd.f32 %v539, %v672
  %v674 = vpop.f32.mrf.mxu0
  %v675 = vadd.f32 %v543, %v674
  %676 = vmatprep.mubr.f32.mxu0 0.0
  %677 = vmatmul.mubr.f32.gmra.mxu0 %v122
  %v678 = vpop.f32.mrf.mxu0
  %v679 = vadd.f32 %v539, %v678
  %v680 = vpop.f32.mrf.mxu0
  %v681 = vadd.f32 %v543, %v680
  %682 = vmatprep.mubr.f32.mxu0 0.0
  %683 = vmatmul.mubr.f32.gmra.mxu0 %v125
  %v684 = vpop.f32.mrf.mxu0
  %v685 = vadd.f32 %v539, %v684
  %v686 = vpop.f32.mrf.mxu0
  %v687 = vadd.f32 %v543, %v686
  %688 = vdwg.mxu0
  %v689 = vld [vmem:[%s2] sm:$0xff]
  %v690 = vld [vmem:[%s2 + $0x8] sm:$0xff]
  %v691 = vld [vmem:[%s2 + $0x10] sm:$0xff]
  %v692 = vld [vmem:[%s2 + $0x18] sm:$0xff]
  %v693 = vld [vmem:[%s2 + $0x20] sm:$0xff]
  %v694 = vld [vmem:[%s2 + $0x28] sm:$0xff]
  %v695 = vld [vmem:[%s2 + $0x30] sm:$0xff]
  %v696 = vld [vmem:[%s2 + $0x38] sm:$0xff]
  %v697 = vld [vmem:[%s2 + $0x40] sm:$0xff]
  %v698 = vld [vmem:[%s2 + $0x48] sm:$0xff]
  %v699 = vld [vmem:[%s2 + $0x50] sm:$0xff]
  %v700 = vld [vmem:[%s2 + $0x58] sm:$0xff]
  %vm701 = vcmask 392192
  %v703 = vsel %vm701, %v198, 0
  %v706 = vsel %vm701, %v203, 0
  %v709 = vsel %vm701, %v208, 0
  %v712 = vsel %vm701, %v213, 0
  %v715 = vsel %vm701, %v218, 0
  %v718 = vsel %vm701, %v223, 0
  %v721 = vsel %vm701, %v228, 0
  %v724 = vsel %vm701, %v233, 0
  %v727 = vsel %vm701, %v238, 0
  %v730 = vsel %vm701, %v243, 0
  %v733 = vsel %vm701, %v248, 0
  %v736 = vsel %vm701, %v253, 0
  %v739 = vsel %vm701, %v335, 0
  %v742 = vsel %vm701, %v340, 0
  %v745 = vsel %vm701, %v345, 0
  %v748 = vsel %vm701, %v350, 0
  %v751 = vsel %vm701, %v355, 0
  %v754 = vsel %vm701, %v360, 0
  %v757 = vsel %vm701, %v365, 0
  %v760 = vsel %vm701, %v370, 0
  %v763 = vsel %vm701, %v375, 0
  %v766 = vsel %vm701, %v380, 0
  %v769 = vsel %vm701, %v385, 0
  %v772 = vsel %vm701, %v390, 0
  %774 = vmatprep.subr.mxu0 0.0
  %775 = vmatpush1.xpose.msra.mxu0 0.0
  %776 = vmatprep.subr.mxu0 0.0
  %777 = vmatpush1.xpose.msra.mxu0 0.0
  %778 = vmatprep.subr.mxu0 0.0
  %779 = vmatpush1.xpose.msra.mxu0 0.0
  %780 = vmatprep.subr.mxu0 0.0
  %781 = vmatpush1.xpose.msra.mxu0 0.0
  %782 = vmatprep.subr.mxu0 0.0
  %783 = vmatpush1.xpose.msra.mxu0 %v772
  %784 = vmatprep.subr.mxu0 0.0
  %785 = vmatpush1.xpose.msra.mxu0 %v769
  %786 = vmatprep.subr.mxu0 0.0
  %787 = vmatpush1.xpose.msra.mxu0 %v766
  %788 = vmatprep.subr.mxu0 0.0
  %789 = vmatpush1.xpose.msra.mxu0 %v763
  %790 = vmatprep.subr.mxu0 0.0
  %791 = vmatpush1.xpose.msra.mxu0 %v760
  %792 = vmatprep.subr.mxu0 0.0
  %793 = vmatpush1.xpose.msra.mxu0 %v757
  %794 = vmatprep.subr.mxu0 0.0
  %795 = vmatpush1.xpose.msra.mxu0 %v754
  %796 = vmatprep.subr.mxu0 0.0
  %797 = vmatpush1.xpose.msra.mxu0 %v751
  %798 = vmatprep.subr.mxu0 0.0
  %799 = vmatpush1.xpose.msra.mxu0 %v748
  %800 = vmatprep.subr.mxu0 0.0
  %801 = vmatpush1.xpose.msra.mxu0 %v745
  %802 = vmatprep.subr.mxu0 0.0
  %803 = vmatpush1.xpose.msra.mxu0 %v742
  %804 = vmatprep.subr.mxu0 0.0
  %805 = vmatpush1.xpose.msra.mxu0 %v739
  %806 = vmatprep.subr.mxu0 0.0
  %807 = vmatpush2.xpose.msra.mxu0 0.0
  %808 = vmatprep.subr.mxu0 0.0
  %809 = vmatpush2.xpose.msra.mxu0 0.0
  %810 = vmatprep.subr.mxu0 0.0
  %811 = vmatpush2.xpose.msra.mxu0 0.0
  %812 = vmatprep.subr.mxu0 0.0
  %813 = vmatpush2.xpose.msra.mxu0 0.0
  %814 = vmatprep.subr.mxu0 0.0
  %815 = vmatpush2.xpose.msra.mxu0 0.0
  %816 = vmatprep.subr.mxu0 0.0
  %817 = vmatpush2.xpose.msra.mxu0 0.0
  %818 = vmatprep.subr.mxu0 0.0
  %819 = vmatpush2.xpose.msra.mxu0 0.0
  %820 = vmatprep.subr.mxu0 0.0
  %821 = vmatpush2.xpose.msra.mxu0 0.0
  %822 = vmatprep.subr.mxu0 0.0
  %823 = vmatpush2.xpose.msra.mxu0 0.0
  %824 = vmatprep.subr.mxu0 0.0
  %825 = vmatpush2.xpose.msra.mxu0 0.0
  %826 = vmatprep.subr.mxu0 0.0
  %827 = vmatpush2.xpose.msra.mxu0 0.0
  %828 = vmatprep.subr.mxu0 0.0
  %829 = vmatpush2.xpose.msra.mxu0 0.0
  %830 = vmatprep.subr.mxu0 0.0
  %831 = vmatpush2.xpose.msra.mxu0 0.0
  %832 = vmatprep.subr.mxu0 0.0
  %833 = vmatpush2.xpose.msra.mxu0 0.0
  %834 = vmatprep.subr.mxu0 0.0
  %835 = vmatpush2.xpose.msra.mxu0 0.0
  %836 = vmatprep.subr.mxu0 0.0
  %837 = vmatpush2.xpose.msra.mxu0 0.0
  %838 = vmatprep.mubr.f32.mxu0 0.0
  %839 = vmatmul.mubr.f32.gmra.mxu0 %v703
  %v840 = vpop.f32.mrf.mxu0
  %v841 = vadd.f32 %v689, %v840
  %v842 = vpop.f32.mrf.mxu0
  %843 = vmatprep.mubr.f32.mxu0 0.0
  %844 = vmatmul.mubr.f32.gmra.mxu0 %v706
  %v845 = vpop.f32.mrf.mxu0
  %v846 = vadd.f32 %v690, %v845
  %v847 = vpop.f32.mrf.mxu0
  %848 = vmatprep.mubr.f32.mxu0 0.0
  %849 = vmatmul.mubr.f32.gmra.mxu0 %v709
  %v850 = vpop.f32.mrf.mxu0
  %v851 = vadd.f32 %v691, %v850
  %v852 = vpop.f32.mrf.mxu0
  %853 = vmatprep.mubr.f32.mxu0 0.0
  %854 = vmatmul.mubr.f32.gmra.mxu0 %v712
  %v855 = vpop.f32.mrf.mxu0
  %v856 = vadd.f32 %v692, %v855
  %v857 = vpop.f32.mrf.mxu0
  %858 = vmatprep.mubr.f32.mxu0 0.0
  %859 = vmatmul.mubr.f32.gmra.mxu0 %v715
  %v860 = vpop.f32.mrf.mxu0
  %v861 = vadd.f32 %v693, %v860
  %v862 = vpop.f32.mrf.mxu0
  %863 = vmatprep.mubr.f32.mxu0 0.0
  %864 = vmatmul.mubr.f32.gmra.mxu0 %v718
  %v865 = vpop.f32.mrf.mxu0
  %v866 = vadd.f32 %v694, %v865
  %v867 = vpop.f32.mrf.mxu0
  %868 = vmatprep.mubr.f32.mxu0 0.0
  %869 = vmatmul.mubr.f32.gmra.mxu0 %v721
  %v870 = vpop.f32.mrf.mxu0
  %v871 = vadd.f32 %v695, %v870
  %v872 = vpop.f32.mrf.mxu0
  %873 = vmatprep.mubr.f32.mxu0 0.0
  %874 = vmatmul.mubr.f32.gmra.mxu0 %v724
  %v875 = vpop.f32.mrf.mxu0
  %v876 = vadd.f32 %v696, %v875
  %v877 = vpop.f32.mrf.mxu0
  %878 = vmatprep.mubr.f32.mxu0 0.0
  %879 = vmatmul.mubr.f32.gmra.mxu0 %v727
  %v880 = vpop.f32.mrf.mxu0
  %v881 = vadd.f32 %v697, %v880
  %v882 = vpop.f32.mrf.mxu0
  %883 = vmatprep.mubr.f32.mxu0 0.0
  %884 = vmatmul.mubr.f32.gmra.mxu0 %v730
  %v885 = vpop.f32.mrf.mxu0
  %v886 = vadd.f32 %v698, %v885
  %v887 = vpop.f32.mrf.mxu0
  %888 = vmatprep.mubr.f32.mxu0 0.0
  %889 = vmatmul.mubr.f32.gmra.mxu0 %v733
  %v890 = vpop.f32.mrf.mxu0
  %v891 = vadd.f32 %v699, %v890
  %v892 = vpop.f32.mrf.mxu0
  %893 = vmatprep.mubr.f32.mxu0 0.0
  %894 = vmatmul.mubr.f32.gmra.mxu0 %v736
  %v895 = vpop.f32.mrf.mxu0
  %v896 = vadd.f32 %v700, %v895
  %v897 = vpop.f32.mrf.mxu0
  %898 = vdwg.mxu0
  %vm899 = vcmask 785408
  %v900 = vsel %vm899, %v841, -inf
  %901 = vmax.xlane.f32.xlu0 %v900
  %v902 = vpop.xlane.xlu0 %901
  %v903 = vsel %vm899, %v846, -inf
  %904 = vmax.xlane.f32.xlu0 %v903
  %v905 = vpop.xlane.xlu0 %904
  %v906 = vsel %vm899, %v851, -inf
  %907 = vmax.xlane.f32.xlu0 %v906
  %v908 = vpop.xlane.xlu0 %907
  %v909 = vsel %vm899, %v856, -inf
  %910 = vmax.xlane.f32.xlu0 %v909
  %v911 = vpop.xlane.xlu0 %910
  %v912 = vsel %vm899, %v861, -inf
  %913 = vmax.xlane.f32.xlu0 %v912
  %v914 = vpop.xlane.xlu0 %913
  %v915 = vsel %vm899, %v866, -inf
  %916 = vmax.xlane.f32.xlu0 %v915
  %v917 = vpop.xlane.xlu0 %916
  %v918 = vsel %vm899, %v871, -inf
  %919 = vmax.xlane.f32.xlu0 %v918
  %v920 = vpop.xlane.xlu0 %919
  %v921 = vsel %vm899, %v876, -inf
  %922 = vmax.xlane.f32.xlu0 %v921
  %v923 = vpop.xlane.xlu0 %922
  %v924 = vsel %vm899, %v881, -inf
  %925 = vmax.xlane.f32.xlu0 %v924
  %v926 = vpop.xlane.xlu0 %925
  %v927 = vsel %vm899, %v886, -inf
  %928 = vmax.xlane.f32.xlu0 %v927
  %v929 = vpop.xlane.xlu0 %928
  %v930 = vsel %vm899, %v891, -inf
  %931 = vmax.xlane.f32.xlu0 %v930
  %v932 = vpop.xlane.xlu0 %931
  %v933 = vsel %vm899, %v896, -inf
  %934 = vmax.xlane.f32.xlu0 %v933
  %v935 = vpop.xlane.xlu0 %934
  %v936 = vsub.f32 %v841, %v902
  %v937 = vsub.f32 %v846, %v905
  %v938 = vsub.f32 %v851, %v908
  %v939 = vsub.f32 %v856, %v911
  %v940 = vsub.f32 %v861, %v914
  %v941 = vsub.f32 %v866, %v917
  %v942 = vsub.f32 %v871, %v920
  %v943 = vsub.f32 %v876, %v923
  %v944 = vsub.f32 %v881, %v926
  %v945 = vsub.f32 %v886, %v929
  %v946 = vsub.f32 %v891, %v932
  %v947 = vsub.f32 %v896, %v935
  %v948 = vmul.f32 %v936, 1.442695
  %v949 = vpow.pop %v948
  %v950 = vmul.f32 %v937, 1.442695
  %v951 = vpow.pop %v950
  %v952 = vmul.f32 %v938, 1.442695
  %v953 = vpow.pop %v952
  %v954 = vmul.f32 %v939, 1.442695
  %v955 = vpow.pop %v954
  %v956 = vmul.f32 %v940, 1.442695
  %v957 = vpow.pop %v956
  %v958 = vmul.f32 %v941, 1.442695
  %v959 = vpow.pop %v958
  %v960 = vmul.f32 %v942, 1.442695
  %v961 = vpow.pop %v960
  %v962 = vmul.f32 %v943, 1.442695
  %v963 = vpow.pop %v962
  %v964 = vmul.f32 %v944, 1.442695
  %v965 = vpow.pop %v964
  %v966 = vmul.f32 %v945, 1.442695
  %v967 = vpow.pop %v966
  %v968 = vmul.f32 %v946, 1.442695
  %v969 = vpow.pop %v968
  %v970 = vmul.f32 %v947, 1.442695
  %v971 = vpow.pop %v970
  %v972 = vsel %vm899, %v949, 0.0
  %973 = vadd.xlane.f32.xlu0 %v972
  %v974 = vpop.xlane.xlu0 %973
  %v975 = vsel %vm899, %v951, 0.0
  %976 = vadd.xlane.f32.xlu0 %v975
  %v977 = vpop.xlane.xlu0 %976
  %v978 = vsel %vm899, %v953, 0.0
  %979 = vadd.xlane.f32.xlu0 %v978
  %v980 = vpop.xlane.xlu0 %979
  %v981 = vsel %vm899, %v955, 0.0
  %982 = vadd.xlane.f32.xlu0 %v981
  %v983 = vpop.xlane.xlu0 %982
  %v984 = vsel %vm899, %v957, 0.0
  %985 = vadd.xlane.f32.xlu0 %v984
  %v986 = vpop.xlane.xlu0 %985
  %v987 = vsel %vm899, %v959, 0.0
  %988 = vadd.xlane.f32.xlu0 %v987
  %v989 = vpop.xlane.xlu0 %988
  %v990 = vsel %vm899, %v961, 0.0
  %991 = vadd.xlane.f32.xlu0 %v990
  %v992 = vpop.xlane.xlu0 %991
  %v993 = vsel %vm899, %v963, 0.0
  %994 = vadd.xlane.f32.xlu0 %v993
  %v995 = vpop.xlane.xlu0 %994
  %v996 = vsel %vm899, %v965, 0.0
  %997 = vadd.xlane.f32.xlu0 %v996
  %v998 = vpop.xlane.xlu0 %997
  %v999 = vsel %vm899, %v967, 0.0
  %1000 = vadd.xlane.f32.xlu0 %v999
  %v1001 = vpop.xlane.xlu0 %1000
  %v1002 = vsel %vm899, %v969, 0.0
  %1003 = vadd.xlane.f32.xlu0 %v1002
  %v1004 = vpop.xlane.xlu0 %1003
  %v1005 = vsel %vm899, %v971, 0.0
  %1006 = vadd.xlane.f32.xlu0 %v1005
  %v1007 = vpop.xlane.xlu0 %1006
  %v1008 = vrcp.pop %v974
  %v1009 = vrcp.pop %v977
  %v1010 = vrcp.pop %v980
  %v1011 = vrcp.pop %v983
  %v1012 = vrcp.pop %v986
  %v1013 = vrcp.pop %v989
  %v1014 = vrcp.pop %v992
  %v1015 = vrcp.pop %v995
  %v1016 = vrcp.pop %v998
  %v1017 = vrcp.pop %v1001
  %v1018 = vrcp.pop %v1004
  %v1019 = vrcp.pop %v1007
  %v1020 = vmul.f32 %v949, %v1008
  %v1021 = vmul.f32 %v951, %v1009
  %v1022 = vmul.f32 %v953, %v1010
  %v1023 = vmul.f32 %v955, %v1011
  %v1024 = vmul.f32 %v957, %v1012
  %v1025 = vmul.f32 %v959, %v1013
  %v1026 = vmul.f32 %v961, %v1014
  %v1027 = vmul.f32 %v963, %v1015
  %v1028 = vmul.f32 %v965, %v1016
  %v1029 = vmul.f32 %v967, %v1017
  %v1030 = vmul.f32 %v969, %v1018
  %v1031 = vmul.f32 %v971, %v1019
  %v1033 = vsel %vm899, %v1020, 0
  %v1036 = vsel %vm899, %v1021, 0
  %v1039 = vsel %vm899, %v1022, 0
  %v1042 = vsel %vm899, %v1023, 0
  %v1045 = vsel %vm899, %v1024, 0
  %v1048 = vsel %vm899, %v1025, 0
  %v1051 = vsel %vm899, %v1026, 0
  %v1054 = vsel %vm899, %v1027, 0
  %v1057 = vsel %vm899, %v1028, 0
  %v1060 = vsel %vm899, %v1029, 0
  %v1063 = vsel %vm899, %v1030, 0
  %v1066 = vsel %vm899, %v1031, 0
  %1068 = vmatprep.subr.mxu0 0.0
  %1069 = vmatpush1.msra.mxu0 0.0
  %1070 = vmatprep.subr.mxu0 0.0
  %1071 = vmatpush1.msra.mxu0 0.0
  %1072 = vmatprep.subr.mxu0 0.0
  %1073 = vmatpush1.msra.mxu0 0.0
  %1074 = vmatprep.subr.mxu0 0.0
  %1075 = vmatpush1.msra.mxu0 0.0
  %1076 = vmatprep.subr.mxu0 0.0
  %1077 = vmatpush1.msra.mxu0 %v527
  %1078 = vmatprep.subr.mxu0 0.0
  %1079 = vmatpush1.msra.mxu0 %v522
  %1080 = vmatprep.subr.mxu0 0.0
  %1081 = vmatpush1.msra.mxu0 %v517
  %1082 = vmatprep.subr.mxu0 0.0
  %1083 = vmatpush1.msra.mxu0 %v512
  %1084 = vmatprep.subr.mxu0 0.0
  %1085 = vmatpush1.msra.mxu0 %v507
  %1086 = vmatprep.subr.mxu0 0.0
  %1087 = vmatpush1.msra.mxu0 %v502
  %1088 = vmatprep.subr.mxu0 0.0
  %1089 = vmatpush1.msra.mxu0 %v497
  %1090 = vmatprep.subr.mxu0 0.0
  %1091 = vmatpush1.msra.mxu0 %v492
  %1092 = vmatprep.subr.mxu0 0.0
  %1093 = vmatpush1.msra.mxu0 %v487
  %1094 = vmatprep.subr.mxu0 0.0
  %1095 = vmatpush1.msra.mxu0 %v482
  %1096 = vmatprep.subr.mxu0 0.0
  %1097 = vmatpush1.msra.mxu0 %v477
  %1098 = vmatprep.subr.mxu0 0.0
  %1099 = vmatpush1.msra.mxu0 %v472
  %1100 = vmatprep.subr.mxu0 0.0
  %1101 = vmatpush2.msra.mxu0 0.0
  %1102 = vmatprep.subr.mxu0 0.0
  %1103 = vmatpush2.msra.mxu0 0.0
  %1104 = vmatprep.subr.mxu0 0.0
  %1105 = vmatpush2.msra.mxu0 0.0
  %1106 = vmatprep.subr.mxu0 0.0
  %1107 = vmatpush2.msra.mxu0 0.0
  %1108 = vmatprep.subr.mxu0 0.0
  %1109 = vmatpush2.msra.mxu0 0.0
  %1110 = vmatprep.subr.mxu0 0.0
  %1111 = vmatpush2.msra.mxu0 0.0
  %1112 = vmatprep.subr.mxu0 0.0
  %1113 = vmatpush2.msra.mxu0 0.0
  %1114 = vmatprep.subr.mxu0 0.0
  %1115 = vmatpush2.msra.mxu0 0.0
  %1116 = vmatprep.subr.mxu0 0.0
  %1117 = vmatpush2.msra.mxu0 0.0
  %1118 = vmatprep.subr.mxu0 0.0
  %1119 = vmatpush2.msra.mxu0 0.0
  %1120 = vmatprep.subr.mxu0 0.0
  %1121 = vmatpush2.msra.mxu0 0.0
  %1122 = vmatprep.subr.mxu0 0.0
  %1123 = vmatpush2.msra.mxu0 0.0
  %1124 = vmatprep.subr.mxu0 0.0
  %1125 = vmatpush2.msra.mxu0 0.0
  %1126 = vmatprep.subr.mxu0 0.0
  %1127 = vmatpush2.msra.mxu0 0.0
  %1128 = vmatprep.subr.mxu0 0.0
  %1129 = vmatpush2.msra.mxu0 0.0
  %1130 = vmatprep.subr.mxu0 0.0
  %1131 = vmatpush2.msra.mxu0 0.0
  %1132 = vmatprep.mubr.f32.mxu0 0.0
  %1133 = vmatmul.mubr.f32.gmra.mxu0 %v1033
  %v1134 = vpop.f32.mrf.mxu0
  %v1135 = vadd.f32 0.0, %v1134
  %v1136 = vpop.f32.mrf.mxu0
  %1137 = vmatprep.mubr.f32.mxu0 0.0
  %1138 = vmatmul.mubr.f32.gmra.mxu0 %v1036
  %v1139 = vpop.f32.mrf.mxu0
  %v1140 = vadd.f32 0.0, %v1139
  %v1141 = vpop.f32.mrf.mxu0
  %1142 = vmatprep.mubr.f32.mxu0 0.0
  %1143 = vmatmul.mubr.f32.gmra.mxu0 %v1039
  %v1144 = vpop.f32.mrf.mxu0
  %v1145 = vadd.f32 0.0, %v1144
  %v1146 = vpop.f32.mrf.mxu0
  %1147 = vmatprep.mubr.f32.mxu0 0.0
  %1148 = vmatmul.mubr.f32.gmra.mxu0 %v1042
  %v1149 = vpop.f32.mrf.mxu0
  %v1150 = vadd.f32 0.0, %v1149
  %v1151 = vpop.f32.mrf.mxu0
  %1152 = vmatprep.mubr.f32.mxu0 0.0
  %1153 = vmatmul.mubr.f32.gmra.mxu0 %v1045
  %v1154 = vpop.f32.mrf.mxu0
  %v1155 = vadd.f32 0.0, %v1154
  %v1156 = vpop.f32.mrf.mxu0
  %1157 = vmatprep.mubr.f32.mxu0 0.0
  %1158 = vmatmul.mubr.f32.gmra.mxu0 %v1048
  %v1159 = vpop.f32.mrf.mxu0
  %v1160 = vadd.f32 0.0, %v1159
  %v1161 = vpop.f32.mrf.mxu0
  %1162 = vmatprep.mubr.f32.mxu0 0.0
  %1163 = vmatmul.mubr.f32.gmra.mxu0 %v1051
  %v1164 = vpop.f32.mrf.mxu0
  %v1165 = vadd.f32 0.0, %v1164
  %v1166 = vpop.f32.mrf.mxu0
  %1167 = vmatprep.mubr.f32.mxu0 0.0
  %1168 = vmatmul.mubr.f32.gmra.mxu0 %v1054
  %v1169 = vpop.f32.mrf.mxu0
  %v1170 = vadd.f32 0.0, %v1169
  %v1171 = vpop.f32.mrf.mxu0
  %1172 = vmatprep.mubr.f32.mxu0 0.0
  %1173 = vmatmul.mubr.f32.gmra.mxu0 %v1057
  %v1174 = vpop.f32.mrf.mxu0
  %v1175 = vadd.f32 0.0, %v1174
  %v1176 = vpop.f32.mrf.mxu0
  %1177 = vmatprep.mubr.f32.mxu0 0.0
  %1178 = vmatmul.mubr.f32.gmra.mxu0 %v1060
  %v1179 = vpop.f32.mrf.mxu0
  %v1180 = vadd.f32 0.0, %v1179
  %v1181 = vpop.f32.mrf.mxu0
  %1182 = vmatprep.mubr.f32.mxu0 0.0
  %1183 = vmatmul.mubr.f32.gmra.mxu0 %v1063
  %v1184 = vpop.f32.mrf.mxu0
  %v1185 = vadd.f32 0.0, %v1184
  %v1186 = vpop.f32.mrf.mxu0
  %1187 = vmatprep.mubr.f32.mxu0 0.0
  %1188 = vmatmul.mubr.f32.gmra.mxu0 %v1066
  %v1189 = vpop.f32.mrf.mxu0
  %v1190 = vadd.f32 0.0, %v1189
  %v1191 = vpop.f32.mrf.mxu0
  %1192 = vdwg.mxu0
  %v1193 = vld [vmem:[%s3] sm:$0xff]
  %v1195 = vsel %vm899, %v1193, 0
  %1197 = vmatprep.subr.mxu0 0.0
  %1198 = vmatpush1.msra.mxu0 0.0
  %1199 = vmatprep.subr.mxu0 0.0
  %1200 = vmatpush1.msra.mxu0 0.0
  %1201 = vmatprep.subr.mxu0 0.0
  %1202 = vmatpush1.msra.mxu0 0.0
  %1203 = vmatprep.subr.mxu0 0.0
  %1204 = vmatpush1.msra.mxu0 0.0
  %1205 = vmatprep.subr.mxu0 0.0
  %1206 = vmatpush1.msra.mxu0 %v1190
  %1207 = vmatprep.subr.mxu0 0.0
  %1208 = vmatpush1.msra.mxu0 %v1185
  %1209 = vmatprep.subr.mxu0 0.0
  %1210 = vmatpush1.msra.mxu0 %v1180
  %1211 = vmatprep.subr.mxu0 0.0
  %1212 = vmatpush1.msra.mxu0 %v1175
  %1213 = vmatprep.subr.mxu0 0.0
  %1214 = vmatpush1.msra.mxu0 %v1170
  %1215 = vmatprep.subr.mxu0 0.0
  %1216 = vmatpush1.msra.mxu0 %v1165
  %1217 = vmatprep.subr.mxu0 0.0
  %1218 = vmatpush1.msra.mxu0 %v1160
  %1219 = vmatprep.subr.mxu0 0.0
  %1220 = vmatpush1.msra.mxu0 %v1155
  %1221 = vmatprep.subr.mxu0 0.0
  %1222 = vmatpush1.msra.mxu0 %v1150
  %1223 = vmatprep.subr.mxu0 0.0
  %1224 = vmatpush1.msra.mxu0 %v1145
  %1225 = vmatprep.subr.mxu0 0.0
  %1226 = vmatpush1.msra.mxu0 %v1140
  %1227 = vmatprep.subr.mxu0 0.0
  %1228 = vmatpush1.msra.mxu0 %v1135
  %1229 = vmatprep.subr.mxu0 0.0
  %1230 = vmatpush2.msra.mxu0 0.0
  %1231 = vmatprep.subr.mxu0 0.0
  %1232 = vmatpush2.msra.mxu0 0.0
  %1233 = vmatprep.subr.mxu0 0.0
  %1234 = vmatpush2.msra.mxu0 0.0
  %1235 = vmatprep.subr.mxu0 0.0
  %1236 = vmatpush2.msra.mxu0 0.0
  %1237 = vmatprep.subr.mxu0 0.0
  %1238 = vmatpush2.msra.mxu0 0.0
  %1239 = vmatprep.subr.mxu0 0.0
  %1240 = vmatpush2.msra.mxu0 0.0
  %1241 = vmatprep.subr.mxu0 0.0
  %1242 = vmatpush2.msra.mxu0 0.0
  %1243 = vmatprep.subr.mxu0 0.0
  %1244 = vmatpush2.msra.mxu0 0.0
  %1245 = vmatprep.subr.mxu0 0.0
  %1246 = vmatpush2.msra.mxu0 0.0
  %1247 = vmatprep.subr.mxu0 0.0
  %1248 = vmatpush2.msra.mxu0 0.0
  %1249 = vmatprep.subr.mxu0 0.0
  %1250 = vmatpush2.msra.mxu0 0.0
  %1251 = vmatprep.subr.mxu0 0.0
  %1252 = vmatpush2.msra.mxu0 0.0
  %1253 = vmatprep.subr.mxu0 0.0
  %1254 = vmatpush2.msra.mxu0 0.0
  %1255 = vmatprep.subr.mxu0 0.0
  %1256 = vmatpush2.msra.mxu0 0.0
  %1257 = vmatprep.subr.mxu0 0.0
  %1258 = vmatpush2.msra.mxu0 0.0
  %1259 = vmatprep.subr.mxu0 0.0
  %1260 = vmatpush2.msra.mxu0 0.0
  %1261 = vmatprep.mubr.f32.mxu0 0.0
  %1262 = vmatmul.mubr.f32.gmra.mxu0 %v1195
  %v1263 = vpop.f32.mrf.mxu0
  %v1264 = vadd.f32 0.0, %v1263
  %v1265 = vpop.f32.mrf.mxu0
  %1266 = vdwg.mxu0
  %1267 = vst.msk [vmem:[%s20] sm:$0xff] %vm701, %v1264
  %v1268 = vld [vmem:[%s12] sm:$0xff]
  %v1269 = vld [vmem:[%s12 + $0x8] sm:$0xff]
  %v1270 = vld [vmem:[%s12 + $0x10] sm:$0xff]
  %v1271 = vld [vmem:[%s12 + $0x18] sm:$0xff]
  %v1272 = vld [vmem:[%s12 + $0x20] sm:$0xff]
  %v1273 = vld [vmem:[%s12 + $0x28] sm:$0xff]
  %v1274 = vld [vmem:[%s12 + $0x30] sm:$0xff]
  %v1275 = vld [vmem:[%s12 + $0x38] sm:$0xff]
  %v1276 = vld [vmem:[%s12 + $0x40] sm:$0xff]
  %v1277 = vld [vmem:[%s12 + $0x48] sm:$0xff]
  %v1278 = vld [vmem:[%s12 + $0x50] sm:$0xff]
  %v1279 = vld [vmem:[%s12 + $0x58] sm:$0xff]
  %v1281 = vsel %vm701, %v1135, 0
  %v1284 = vsel %vm701, %v1140, 0
  %v1287 = vsel %vm701, %v1145, 0
  %v1290 = vsel %vm701, %v1150, 0
  %v1293 = vsel %vm701, %v1155, 0
  %v1296 = vsel %vm701, %v1160, 0
  %v1299 = vsel %vm701, %v1165, 0
  %v1302 = vsel %vm701, %v1170, 0
  %v1305 = vsel %vm701, %v1175, 0
  %v1308 = vsel %vm701, %v1180, 0
  %v1311 = vsel %vm701, %v1185, 0
  %v1314 = vsel %vm701, %v1190, 0
  %1316 = vmatprep.subr.mxu0 0.0
  %1317 = vmatpush1.msra.mxu0 0.0
  %1318 = vmatprep.subr.mxu0 0.0
  %1319 = vmatpush1.msra.mxu0 0.0
  %1320 = vmatprep.subr.mxu0 0.0
  %1321 = vmatpush1.msra.mxu0 0.0
  %1322 = vmatprep.subr.mxu0 0.0
  %1323 = vmatpush1.msra.mxu0 0.0
  %1324 = vmatprep.subr.mxu0 0.0
  %1325 = vmatpush1.msra.mxu0 0.0
  %1326 = vmatprep.subr.mxu0 0.0
  %1327 = vmatpush1.msra.mxu0 0.0
  %1328 = vmatprep.subr.mxu0 0.0
  %1329 = vmatpush1.msra.mxu0 0.0
  %1330 = vmatprep.subr.mxu0 0.0
  %1331 = vmatpush1.msra.mxu0 0.0
  %1332 = vmatprep.subr.mxu0 0.0
  %1333 = vmatpush1.msra.mxu0 0.0
  %1334 = vmatprep.subr.mxu0 0.0
  %1335 = vmatpush1.msra.mxu0 0.0
  %1336 = vmatprep.subr.mxu0 %v1279
  %1337 = vmatpush1.msra.mxu0 %v1278
  %1338 = vmatprep.subr.mxu0 %v1277
  %1339 = vmatpush1.msra.mxu0 %v1276
  %1340 = vmatprep.subr.mxu0 %v1275
  %1341 = vmatpush1.msra.mxu0 %v1274
  %1342 = vmatprep.subr.mxu0 %v1273
  %1343 = vmatpush1.msra.mxu0 %v1272
  %1344 = vmatprep.subr.mxu0 %v1271
  %1345 = vmatpush1.msra.mxu0 %v1270
  %1346 = vmatprep.subr.mxu0 %v1269
  %1347 = vmatpush1.msra.mxu0 %v1268
  %1348 = vmatprep.subr.mxu0 0.0
  %1349 = vmatpush2.msra.mxu0 0.0
  %1350 = vmatprep.subr.mxu0 0.0
  %1351 = vmatpush2.msra.mxu0 0.0
  %1352 = vmatprep.subr.mxu0 0.0
  %1353 = vmatpush2.msra.mxu0 0.0
  %1354 = vmatprep.subr.mxu0 0.0
  %1355 = vmatpush2.msra.mxu0 0.0
  %1356 = vmatprep.subr.mxu0 0.0
  %1357 = vmatpush2.msra.mxu0 0.0
  %1358 = vmatprep.subr.mxu0 0.0
  %1359 = vmatpush2.msra.mxu0 0.0
  %1360 = vmatprep.subr.mxu0 0.0
  %1361 = vmatpush2.msra.mxu0 0.0
  %1362 = vmatprep.subr.mxu0 0.0
  %1363 = vmatpush2.msra.mxu0 0.0
  %1364 = vmatprep.subr.mxu0 0.0
  %1365 = vmatpush2.msra.mxu0 0.0
  %1366 = vmatprep.subr.mxu0 0.0
  %1367 = vmatpush2.msra.mxu0 0.0
  %1368 = vmatprep.subr.mxu0 0.0
  %1369 = vmatpush2.msra.mxu0 0.0
  %1370 = vmatprep.subr.mxu0 0.0
  %1371 = vmatpush2.msra.mxu0 0.0
  %1372 = vmatprep.subr.mxu0 0.0
  %1373 = vmatpush2.msra.mxu0 0.0
  %1374 = vmatprep.subr.mxu0 0.0
  %1375 = vmatpush2.msra.mxu0 0.0
  %1376 = vmatprep.subr.mxu0 0.0
  %1377 = vmatpush2.msra.mxu0 0.0
  %1378 = vmatprep.subr.mxu0 0.0
  %1379 = vmatpush2.msra.mxu0 0.0
  %1380 = vmatprep.mubr.f32.mxu0 0.0
  %1381 = vmatmul.mubr.f32.gmra.mxu0 %v1281
  %v1382 = vpop.f32.mrf.mxu0
  %v1383 = vadd.f32 0.0, %v1382
  %v1384 = vpop.f32.mrf.mxu0
  %v1385 = vadd.f32 0.0, %v1384
  %1386 = vmatprep.mubr.f32.mxu0 0.0
  %1387 = vmatmul.mubr.f32.gmra.mxu0 %v1284
  %v1388 = vpop.f32.mrf.mxu0
  %v1389 = vadd.f32 0.0, %v1388
  %v1390 = vpop.f32.mrf.mxu0
  %v1391 = vadd.f32 0.0, %v1390
  %1392 = vmatprep.mubr.f32.mxu0 0.0
  %1393 = vmatmul.mubr.f32.gmra.mxu0 %v1287
  %v1394 = vpop.f32.mrf.mxu0
  %v1395 = vadd.f32 0.0, %v1394
  %v1396 = vpop.f32.mrf.mxu0
  %v1397 = vadd.f32 0.0, %v1396
  %1398 = vmatprep.mubr.f32.mxu0 0.0
  %1399 = vmatmul.mubr.f32.gmra.mxu0 %v1290
  %v1400 = vpop.f32.mrf.mxu0
  %v1401 = vadd.f32 0.0, %v1400
  %v1402 = vpop.f32.mrf.mxu0
  %v1403 = vadd.f32 0.0, %v1402
  %1404 = vmatprep.mubr.f32.mxu0 0.0
  %1405 = vmatmul.mubr.f32.gmra.mxu0 %v1293
  %v1406 = vpop.f32.mrf.mxu0
  %v1407 = vadd.f32 0.0, %v1406
  %v1408 = vpop.f32.mrf.mxu0
  %v1409 = vadd.f32 0.0, %v1408
  %1410 = vmatprep.mubr.f32.mxu0 0.0
  %1411 = vmatmul.mubr.f32.gmra.mxu0 %v1296
  %v1412 = vpop.f32.mrf.mxu0
  %v1413 = vadd.f32 0.0, %v1412
  %v1414 = vpop.f32.mrf.mxu0
  %v1415 = vadd.f32 0.0, %v1414
  %1416 = vmatprep.mubr.f32.mxu0 0.0
  %1417 = vmatmul.mubr.f32.gmra.mxu0 %v1299
  %v1418 = vpop.f32.mrf.mxu0
  %v1419 = vadd.f32 0.0, %v1418
  %v1420 = vpop.f32.mrf.mxu0
  %v1421 = vadd.f32 0.0, %v1420
  %1422 = vmatprep.mubr.f32.mxu0 0.0
  %1423 = vmatmul.mubr.f32.gmra.mxu0 %v1302
  %v1424 = vpop.f32.mrf.mxu0
  %v1425 = vadd.f32 0.0, %v1424
  %v1426 = vpop.f32.mrf.mxu0
  %v1427 = vadd.f32 0.0, %v1426
  %1428 = vmatprep.mubr.f32.mxu0 0.0
  %1429 = vmatmul.mubr.f32.gmra.mxu0 %v1305
  %v1430 = vpop.f32.mrf.mxu0
  %v1431 = vadd.f32 0.0, %v1430
  %v1432 = vpop.f32.mrf.mxu0
  %v1433 = vadd.f32 0.0, %v1432
  %1434 = vmatprep.mubr.f32.mxu0 0.0
  %1435 = vmatmul.mubr.f32.gmra.mxu0 %v1308
  %v1436 = vpop.f32.mrf.mxu0
  %v1437 = vadd.f32 0.0, %v1436
  %v1438 = vpop.f32.mrf.mxu0
  %v1439 = vadd.f32 0.0, %v1438
  %1440 = vmatprep.mubr.f32.mxu0 0.0
  %1441 = vmatmul.mubr.f32.gmra.mxu0 %v1311
  %v1442 = vpop.f32.mrf.mxu0
  %v1443 = vadd.f32 0.0, %v1442
  %v1444 = vpop.f32.mrf.mxu0
  %v1445 = vadd.f32 0.0, %v1444
  %1446 = vmatprep.mubr.f32.mxu0 0.0
  %1447 = vmatmul.mubr.f32.gmra.mxu0 %v1314
  %v1448 = vpop.f32.mrf.mxu0
  %v1449 = vadd.f32 0.0, %v1448
  %v1450 = vpop.f32.mrf.mxu0
  %v1451 = vadd.f32 0.0, %v1450
  %1452 = vdwg.mxu0
  %v1453 = vadd.f32 %v619, %v1383
  %v1454 = vadd.f32 %v621, %v1385
  %v1455 = vadd.f32 %v625, %v1389
  %v1456 = vadd.f32 %v627, %v1391
  %v1457 = vadd.f32 %v631, %v1395
  %v1458 = vadd.f32 %v633, %v1397
  %v1459 = vadd.f32 %v637, %v1401
  %v1460 = vadd.f32 %v639, %v1403
  %v1461 = vadd.f32 %v643, %v1407
  %v1462 = vadd.f32 %v645, %v1409
  %v1463 = vadd.f32 %v649, %v1413
  %v1464 = vadd.f32 %v651, %v1415
  %v1465 = vadd.f32 %v655, %v1419
  %v1466 = vadd.f32 %v657, %v1421
  %v1467 = vadd.f32 %v661, %v1425
  %v1468 = vadd.f32 %v663, %v1427
  %v1469 = vadd.f32 %v667, %v1431
  %v1470 = vadd.f32 %v669, %v1433
  %v1471 = vadd.f32 %v673, %v1437
  %v1472 = vadd.f32 %v675, %v1439
  %v1473 = vadd.f32 %v679, %v1443
  %v1474 = vadd.f32 %v681, %v1445
  %v1475 = vadd.f32 %v685, %v1449
  %v1476 = vadd.f32 %v687, %v1451
  %v1477 = vtanh.pop %v1453
  %v1478 = vtanh.pop %v1454
  %v1479 = vtanh.pop %v1455
  %v1480 = vtanh.pop %v1456
  %v1481 = vtanh.pop %v1457
  %v1482 = vtanh.pop %v1458
  %v1483 = vtanh.pop %v1459
  %v1484 = vtanh.pop %v1460
  %v1485 = vtanh.pop %v1461
  %v1486 = vtanh.pop %v1462
  %v1487 = vtanh.pop %v1463
  %v1488 = vtanh.pop %v1464
  %v1489 = vtanh.pop %v1465
  %v1490 = vtanh.pop %v1466
  %v1491 = vtanh.pop %v1467
  %v1492 = vtanh.pop %v1468
  %v1493 = vtanh.pop %v1469
  %v1494 = vtanh.pop %v1470
  %v1495 = vtanh.pop %v1471
  %v1496 = vtanh.pop %v1472
  %v1497 = vtanh.pop %v1473
  %v1498 = vtanh.pop %v1474
  %v1499 = vtanh.pop %v1475
  %v1500 = vtanh.pop %v1476
  %v1501 = vld [vmem:[%s13] sm:$0x3]
  %v1502 = vld [vmem:[#allocation2] sm:$0x1]
  %1504 = vset.pattern.permute.xlu0 0
  %1505 = vperm.xlu0 %1504, %v1502
  %v1506 = vpop.permute.xlu0 %1505
  %v1508 = vlaneseq
  %v1509 = vshrl.u32 %v1508, 7
  %v1510 = vsub.s32 0, %v1509
  %v1511 = vrot.slane %v1506, %v1510
  %v1513 = vlaneseq
  %v1514 = vshrl.u32 %v1513, 7
  %v1515 = vsub.s32 0, %v1514
  %v1516 = vrot.slane %v1501, %v1515
  %v1517 = vlaneseq
  %v1518 = vshrl.u32 %v1517, 7
  %v1519 = vsub.s32 1, %v1518
  %v1520 = vrot.slane %v1501, %v1519
  %vm1522 = vcmask 523264
  %v1523 = vsel %vm1522, %v1520, 0
  %v1526 = vsel %vm1522, %v1478, 0
  %v1529 = vsel %vm1522, %v1480, 0
  %v1532 = vsel %vm1522, %v1482, 0
  %v1535 = vsel %vm1522, %v1484, 0
  %v1538 = vsel %vm1522, %v1486, 0
  %v1541 = vsel %vm1522, %v1488, 0
  %v1544 = vsel %vm1522, %v1490, 0
  %v1547 = vsel %vm1522, %v1492, 0
  %v1550 = vsel %vm1522, %v1494, 0
  %v1553 = vsel %vm1522, %v1496, 0
  %v1556 = vsel %vm1522, %v1498, 0
  %v1559 = vsel %vm1522, %v1500, 0
  %1561 = vmatprep.subr.mxu0 0.0
  %1562 = vmatpush1.xpose.msra.mxu0 0.0
  %1563 = vmatprep.subr.mxu0 0.0
  %1564 = vmatpush1.xpose.msra.mxu0 0.0
  %1565 = vmatprep.subr.mxu0 0.0
  %1566 = vmatpush1.xpose.msra.mxu0 0.0
  %1567 = vmatprep.subr.mxu0 0.0
  %1568 = vmatpush1.xpose.msra.mxu0 0.0
  %1569 = vmatprep.subr.mxu0 %v1559
  %1570 = vmatpush1.xpose.msra.mxu0 %v1499
  %1571 = vmatprep.subr.mxu0 %v1556
  %1572 = vmatpush1.xpose.msra.mxu0 %v1497
  %1573 = vmatprep.subr.mxu0 %v1553
  %1574 = vmatpush1.xpose.msra.mxu0 %v1495
  %1575 = vmatprep.subr.mxu0 %v1550
  %1576 = vmatpush1.xpose.msra.mxu0 %v1493
  %1577 = vmatprep.subr.mxu0 %v1547
  %1578 = vmatpush1.xpose.msra.mxu0 %v1491
  %1579 = vmatprep.subr.mxu0 %v1544
  %1580 = vmatpush1.xpose.msra.mxu0 %v1489
  %1581 = vmatprep.subr.mxu0 %v1541
  %1582 = vmatpush1.xpose.msra.mxu0 %v1487
  %1583 = vmatprep.subr.mxu0 %v1538
  %1584 = vmatpush1.xpose.msra.mxu0 %v1485
  %1585 = vmatprep.subr.mxu0 %v1535
  %1586 = vmatpush1.xpose.msra.mxu0 %v1483
  %1587 = vmatprep.subr.mxu0 %v1532
  %1588 = vmatpush1.xpose.msra.mxu0 %v1481
  %1589 = vmatprep.subr.mxu0 %v1529
  %1590 = vmatpush1.xpose.msra.mxu0 %v1479
  %1591 = vmatprep.subr.mxu0 %v1526
  %1592 = vmatpush1.xpose.msra.mxu0 %v1477
  %1593 = vmatprep.subr.mxu0 0.0
  %1594 = vmatpush2.xpose.msra.mxu0 0.0
  %1595 = vmatprep.subr.mxu0 0.0
  %1596 = vmatpush2.xpose.msra.mxu0 0.0
  %1597 = vmatprep.subr.mxu0 0.0
  %1598 = vmatpush2.xpose.msra.mxu0 0.0
  %1599 = vmatprep.subr.mxu0 0.0
  %1600 = vmatpush2.xpose.msra.mxu0 0.0
  %1601 = vmatprep.subr.mxu0 0.0
  %1602 = vmatpush2.xpose.msra.mxu0 0.0
  %1603 = vmatprep.subr.mxu0 0.0
  %1604 = vmatpush2.xpose.msra.mxu0 0.0
  %1605 = vmatprep.subr.mxu0 0.0
  %1606 = vmatpush2.xpose.msra.mxu0 0.0
  %1607 = vmatprep.subr.mxu0 0.0
  %1608 = vmatpush2.xpose.msra.mxu0 0.0
  %1609 = vmatprep.subr.mxu0 0.0
  %1610 = vmatpush2.xpose.msra.mxu0 0.0
  %1611 = vmatprep.subr.mxu0 0.0
  %1612 = vmatpush2.xpose.msra.mxu0 0.0
  %1613 = vmatprep.subr.mxu0 0.0
  %1614 = vmatpush2.xpose.msra.mxu0 0.0
  %1615 = vmatprep.subr.mxu0 0.0
  %1616 = vmatpush2.xpose.msra.mxu0 0.0
  %1617 = vmatprep.subr.mxu0 0.0
  %1618 = vmatpush2.xpose.msra.mxu0 0.0
  %1619 = vmatprep.subr.mxu0 0.0
  %1620 = vmatpush2.xpose.msra.mxu0 0.0
  %1621 = vmatprep.subr.mxu0 0.0
  %1622 = vmatpush2.xpose.msra.mxu0 0.0
  %1623 = vmatprep.subr.mxu0 0.0
  %1624 = vmatpush2.xpose.msra.mxu0 0.0
  %1625 = vmatprep.mubr.f32.mxu0 %v1523
  %1626 = vmatmul.mubr.f32.gmra.mxu0 %v1516
  %v1627 = vpop.f32.mrf.mxu0
  %v1628 = vadd.f32 %v1511, %v1627
  %v1629 = vpop.f32.mrf.mxu0
  %1630 = vdwg.mxu0
  %v1631 = vld [vmem:[%s1] sm:$0x1]
  %vm1632 = vcmp.gt.f32.partialorder %v1631, 0.5
  %v1633 = vsel %vm1632, %v1628, -1e+30
  %vm1634 = vcmask 778240
  %v1635 = vsel %vm1634, %v1633, -inf
  %1636 = vmax.xlane.f32.xlu0 %v1635
  %v1637 = vpop.xlane.xlu0 %1636
  %v1638 = vsub.f32 %v1633, %v1637
  %v1639 = vmul.f32 %v1638, 1.442695
  %v1640 = vpow.pop %v1639
  %v1641 = vsel %vm1632, %v1640, 0.0
  %v1642 = vld [vmem:[%s2] sm:$0xff]
  %v1643 = vld [vmem:[%s2 + $0x8] sm:$0xff]
  %v1644 = vld [vmem:[%s2 + $0x10] sm:$0xff]
  %v1645 = vld [vmem:[%s2 + $0x18] sm:$0xff]
  %v1646 = vld [vmem:[%s2 + $0x20] sm:$0xff]
  %v1647 = vld [vmem:[%s2 + $0x28] sm:$0xff]
  %v1648 = vld [vmem:[%s2 + $0x30] sm:$0xff]
  %v1649 = vld [vmem:[%s2 + $0x38] sm:$0xff]
  %v1650 = vld [vmem:[%s2 + $0x40] sm:$0xff]
  %v1651 = vld [vmem:[%s2 + $0x48] sm:$0xff]
  %v1652 = vld [vmem:[%s2 + $0x50] sm:$0xff]
  %v1653 = vld [vmem:[%s2 + $0x58] sm:$0xff]
  %vm1654 = vcmp.gt.f32.partialorder %v1642, -1.0
  %vm1655 = vcmp.gt.f32.partialorder %v1643, -1.0
  %vm1656 = vcmp.gt.f32.partialorder %v1644, -1.0
  %vm1657 = vcmp.gt.f32.partialorder %v1645, -1.0
  %vm1658 = vcmp.gt.f32.partialorder %v1646, -1.0
  %vm1659 = vcmp.gt.f32.partialorder %v1647, -1.0
  %vm1660 = vcmp.gt.f32.partialorder %v1648, -1.0
  %vm1661 = vcmp.gt.f32.partialorder %v1649, -1.0
  %vm1662 = vcmp.gt.f32.partialorder %v1650, -1.0
  %vm1663 = vcmp.gt.f32.partialorder %v1651, -1.0
  %vm1664 = vcmp.gt.f32.partialorder %v1652, -1.0
  %vm1665 = vcmp.gt.f32.partialorder %v1653, -1.0
  %v1666 = vsel %vm1654, 1, 0
  %v1667 = vsel %vm1655, 1, 0
  %v1668 = vsel %vm1656, 1, 0
  %v1669 = vsel %vm1657, 1, 0
  %v1670 = vsel %vm1658, 1, 0
  %v1671 = vsel %vm1659, 1, 0
  %v1672 = vsel %vm1660, 1, 0
  %v1673 = vsel %vm1661, 1, 0
  %v1674 = vsel %vm1662, 1, 0
  %v1675 = vsel %vm1663, 1, 0
  %v1676 = vsel %vm1664, 1, 0
  %v1677 = vsel %vm1665, 1, 0
  %v1678 = vcvt.s32.f32 %v1666
  %v1679 = vcvt.s32.f32 %v1667
  %v1680 = vcvt.s32.f32 %v1668
  %v1681 = vcvt.s32.f32 %v1669
  %v1682 = vcvt.s32.f32 %v1670
  %v1683 = vcvt.s32.f32 %v1671
  %v1684 = vcvt.s32.f32 %v1672
  %v1685 = vcvt.s32.f32 %v1673
  %v1686 = vcvt.s32.f32 %v1674
  %v1687 = vcvt.s32.f32 %v1675
  %v1688 = vcvt.s32.f32 %v1676
  %v1689 = vcvt.s32.f32 %v1677
  %v1691 = vsel %vm899, %v1641, 0
  %1693 = vmatprep.subr.mxu0 0.0
  %1694 = vmatpush1.msra.mxu0 0.0
  %1695 = vmatprep.subr.mxu0 0.0
  %1696 = vmatpush1.msra.mxu0 0.0
  %1697 = vmatprep.subr.mxu0 0.0
  %1698 = vmatpush1.msra.mxu0 0.0
  %1699 = vmatprep.subr.mxu0 0.0
  %1700 = vmatpush1.msra.mxu0 0.0
  %1701 = vmatprep.subr.mxu0 0.0
  %1702 = vmatpush1.msra.mxu0 %v1689
  %1703 = vmatprep.subr.mxu0 0.0
  %1704 = vmatpush1.msra.mxu0 %v1688
  %1705 = vmatprep.subr.mxu0 0.0
  %1706 = vmatpush1.msra.mxu0 %v1687
  %1707 = vmatprep.subr.mxu0 0.0
  %1708 = vmatpush1.msra.mxu0 %v1686
  %1709 = vmatprep.subr.mxu0 0.0
  %1710 = vmatpush1.msra.mxu0 %v1685
  %1711 = vmatprep.subr.mxu0 0.0
  %1712 = vmatpush1.msra.mxu0 %v1684
  %1713 = vmatprep.subr.mxu0 0.0
  %1714 = vmatpush1.msra.mxu0 %v1683
  %1715 = vmatprep.subr.mxu0 0.0
  %1716 = vmatpush1.msra.mxu0 %v1682
  %1717 = vmatprep.subr.mxu0 0.0
  %1718 = vmatpush1.msra.mxu0 %v1681
  %1719 = vmatprep.subr.mxu0 0.0
  %1720 = vmatpush1.msra.mxu0 %v1680
  %1721 = vmatprep.subr.mxu0 0.0
  %1722 = vmatpush1.msra.mxu0 %v1679
  %1723 = vmatprep.subr.mxu0 0.0
  %1724 = vmatpush1.msra.mxu0 %v1678
  %1725 = vmatprep.subr.mxu0 0.0
  %1726 = vmatpush2.msra.mxu0 0.0
  %1727 = vmatprep.subr.mxu0 0.0
  %1728 = vmatpush2.msra.mxu0 0.0
  %1729 = vmatprep.subr.mxu0 0.0
  %1730 = vmatpush2.msra.mxu0 0.0
  %1731 = vmatprep.subr.mxu0 0.0
  %1732 = vmatpush2.msra.mxu0 0.0
  %1733 = vmatprep.subr.mxu0 0.0
  %1734 = vmatpush2.msra.mxu0 0.0
  %1735 = vmatprep.subr.mxu0 0.0
  %1736 = vmatpush2.msra.mxu0 0.0
  %1737 = vmatprep.subr.mxu0 0.0
  %1738 = vmatpush2.msra.mxu0 0.0
  %1739 = vmatprep.subr.mxu0 0.0
  %1740 = vmatpush2.msra.mxu0 0.0
  %1741 = vmatprep.subr.mxu0 0.0
  %1742 = vmatpush2.msra.mxu0 0.0
  %1743 = vmatprep.subr.mxu0 0.0
  %1744 = vmatpush2.msra.mxu0 0.0
  %1745 = vmatprep.subr.mxu0 0.0
  %1746 = vmatpush2.msra.mxu0 0.0
  %1747 = vmatprep.subr.mxu0 0.0
  %1748 = vmatpush2.msra.mxu0 0.0
  %1749 = vmatprep.subr.mxu0 0.0
  %1750 = vmatpush2.msra.mxu0 0.0
  %1751 = vmatprep.subr.mxu0 0.0
  %1752 = vmatpush2.msra.mxu0 0.0
  %1753 = vmatprep.subr.mxu0 0.0
  %1754 = vmatpush2.msra.mxu0 0.0
  %1755 = vmatprep.subr.mxu0 0.0
  %1756 = vmatpush2.msra.mxu0 0.0
  %1757 = vmatprep.mubr.f32.mxu0 0.0
  %1758 = vmatmul.mubr.f32.gmra.mxu0 %v1691
  %v1759 = vpop.f32.mrf.mxu0
  %v1760 = vadd.f32 0.0, %v1759
  %v1761 = vpop.f32.mrf.mxu0
  %1762 = vdwg.mxu0
  %v1763 = vmax.f32 %v1760, 1e-30
  %v1764 = vrcp.pop %v1763
  %v1765 = vmul.f32 %v1641, %v1764
  %1766 = vst.msk [vmem:[%s19] sm:$0x1] %vm1634, %v1765
  %v1767 = vld [vmem:[%s15] sm:$0xff]
  %v1768 = vld [vmem:[%s15 + $0x8] sm:$0xff]
  %v1769 = vld [vmem:[%s15 + $0x10] sm:$0xff]
  %v1770 = vld [vmem:[%s15 + $0x18] sm:$0xff]
  %v1771 = vld [vmem:[%s15 + $0x20] sm:$0xff]
  %v1772 = vld [vmem:[%s15 + $0x28] sm:$0xff]
  %v1773 = vld [vmem:[%s16] sm:$0x1]
  %v1775 = vlaneseq
  %v1776 = vshrl.u32 %v1775, 7
  %v1777 = vsub.s32 0, %v1776
  %v1778 = vrot.slane %v1773, %v1777
  %v1781 = vsel %vm701, %v1264, 0
  %1783 = vmatprep.subr.mxu0 0.0
  %1784 = vmatpush1.msra.mxu0 0.0
  %1785 = vmatprep.subr.mxu0 0.0
  %1786 = vmatpush1.msra.mxu0 0.0
  %1787 = vmatprep.subr.mxu0 0.0
  %1788 = vmatpush1.msra.mxu0 0.0
  %1789 = vmatprep.subr.mxu0 0.0
  %1790 = vmatpush1.msra.mxu0 0.0
  %1791 = vmatprep.subr.mxu0 0.0
  %1792 = vmatpush1.msra.mxu0 0.0
  %1793 = vmatprep.subr.mxu0 0.0
  %1794 = vmatpush1.msra.mxu0 0.0
  %1795 = vmatprep.subr.mxu0 0.0
  %1796 = vmatpush1.msra.mxu0 0.0
  %1797 = vmatprep.subr.mxu0 0.0
  %1798 = vmatpush1.msra.mxu0 0.0
  %1799 = vmatprep.subr.mxu0 0.0
  %1800 = vmatpush1.msra.mxu0 0.0
  %1801 = vmatprep.subr.mxu0 0.0
  %1802 = vmatpush1.msra.mxu0 0.0
  %1803 = vmatprep.subr.mxu0 0.0
  %1804 = vmatpush1.msra.mxu0 %v1772
  %1805 = vmatprep.subr.mxu0 0.0
  %1806 = vmatpush1.msra.mxu0 %v1771
  %1807 = vmatprep.subr.mxu0 0.0
  %1808 = vmatpush1.msra.mxu0 %v1770
  %1809 = vmatprep.subr.mxu0 0.0
  %1810 = vmatpush1.msra.mxu0 %v1769
  %1811 = vmatprep.subr.mxu0 0.0
  %1812 = vmatpush1.msra.mxu0 %v1768
  %1813 = vmatprep.subr.mxu0 0.0
  %1814 = vmatpush1.msra.mxu0 %v1767
  %1815 = vmatprep.subr.mxu0 0.0
  %1816 = vmatpush2.msra.mxu0 0.0
  %1817 = vmatprep.subr.mxu0 0.0
  %1818 = vmatpush2.msra.mxu0 0.0
  %1819 = vmatprep.subr.mxu0 0.0
  %1820 = vmatpush2.msra.mxu0 0.0
  %1821 = vmatprep.subr.mxu0 0.0
  %1822 = vmatpush2.msra.mxu0 0.0
  %1823 = vmatprep.subr.mxu0 0.0
  %1824 = vmatpush2.msra.mxu0 0.0
  %1825 = vmatprep.subr.mxu0 0.0
  %1826 = vmatpush2.msra.mxu0 0.0
  %1827 = vmatprep.subr.mxu0 0.0
  %1828 = vmatpush2.msra.mxu0 0.0
  %1829 = vmatprep.subr.mxu0 0.0
  %1830 = vmatpush2.msra.mxu0 0.0
  %1831 = vmatprep.subr.mxu0 0.0
  %1832 = vmatpush2.msra.mxu0 0.0
  %1833 = vmatprep.subr.mxu0 0.0
  %1834 = vmatpush2.msra.mxu0 0.0
  %1835 = vmatprep.subr.mxu0 0.0
  %1836 = vmatpush2.msra.mxu0 0.0
  %1837 = vmatprep.subr.mxu0 0.0
  %1838 = vmatpush2.msra.mxu0 0.0
  %1839 = vmatprep.subr.mxu0 0.0
  %1840 = vmatpush2.msra.mxu0 0.0
  %1841 = vmatprep.subr.mxu0 0.0
  %1842 = vmatpush2.msra.mxu0 0.0
  %1843 = vmatprep.subr.mxu0 0.0
  %1844 = vmatpush2.msra.mxu0 0.0
  %1845 = vmatprep.subr.mxu0 0.0
  %1846 = vmatpush2.msra.mxu0 0.0
  %1847 = vmatprep.mubr.f32.mxu0 0.0
  %1848 = vmatmul.mubr.f32.gmra.mxu0 %v1781
  %v1849 = vpop.f32.mrf.mxu0
  %v1850 = vadd.f32 %v1778, %v1849
  %v1851 = vpop.f32.mrf.mxu0
  %1852 = vdwg.mxu0
  %v1853 = vtanh.pop %v1850
  %v1854 = vld [vmem:[%s17] sm:$0xff]
  %v1855 = vld [vmem:[%s17 + $0x8] sm:$0xff]
  %v1856 = vld [vmem:[%s17 + $0x10] sm:$0xff]
  %v1857 = vld [vmem:[%s17 + $0x18] sm:$0xff]
  %v1858 = vld [vmem:[%s17 + $0x20] sm:$0xff]
  %v1859 = vld [vmem:[%s17 + $0x28] sm:$0xff]
  %v1860 = vld [vmem:[%s17 + $0x30] sm:$0xff]
  %v1861 = vld [vmem:[%s17 + $0x38] sm:$0xff]
  %v1862 = vld [vmem:[%s17 + $0x40] sm:$0xff]
  %v1863 = vld [vmem:[%s17 + $0x48] sm:$0xff]
  %v1864 = vld [vmem:[%s17 + $0x50] sm:$0xff]
  %v1865 = vld [vmem:[%s17 + $0x58] sm:$0xff]
  %v1866 = vld [vmem:[#allocation3] sm:$0x1]
  %v1868 = vlaneseq
  %v1869 = vshrl.u32 %v1868, 7
  %v1870 = vsub.s32 0, %v1869
  %v1871 = vrot.slane %v1866, %v1870
  %v1874 = vsel %vm899, %v1853, 0
  %1876 = vmatprep.subr.mxu0 0.0
  %1877 = vmatpush1.msra.mxu0 0.0
  %1878 = vmatprep.subr.mxu0 0.0
  %1879 = vmatpush1.msra.mxu0 0.0
  %1880 = vmatprep.subr.mxu0 0.0
  %1881 = vmatpush1.msra.mxu0 0.0
  %1882 = vmatprep.subr.mxu0 0.0
  %1883 = vmatpush1.msra.mxu0 0.0
  %1884 = vmatprep.subr.mxu0 0.0
  %1885 = vmatpush1.msra.mxu0 %v1865
  %1886 = vmatprep.subr.mxu0 0.0
  %1887 = vmatpush1.msra.mxu0 %v1864
  %1888 = vmatprep.subr.mxu0 0.0
  %1889 = vmatpush1.msra.mxu0 %v1863
  %1890 = vmatprep.subr.mxu0 0.0
  %1891 = vmatpush1.msra.mxu0 %v1862
  %1892 = vmatprep.subr.mxu0 0.0
  %1893 = vmatpush1.msra.mxu0 %v1861
  %1894 = vmatprep.subr.mxu0 0.0
  %1895 = vmatpush1.msra.mxu0 %v1860
  %1896 = vmatprep.subr.mxu0 0.0
  %1897 = vmatpush1.msra.mxu0 %v1859
  %1898 = vmatprep.subr.mxu0 0.0
  %1899 = vmatpush1.msra.mxu0 %v1858
  %1900 = vmatprep.subr.mxu0 0.0
  %1901 = vmatpush1.msra.mxu0 %v1857
  %1902 = vmatprep.subr.mxu0 0.0
  %1903 = vmatpush1.msra.mxu0 %v1856
  %1904 = vmatprep.subr.mxu0 0.0
  %1905 = vmatpush1.msra.mxu0 %v1855
  %1906 = vmatprep.subr.mxu0 0.0
  %1907 = vmatpush1.msra.mxu0 %v1854
  %1908 = vmatprep.subr.mxu0 0.0
  %1909 = vmatpush2.msra.mxu0 0.0
  %1910 = vmatprep.subr.mxu0 0.0
  %1911 = vmatpush2.msra.mxu0 0.0
  %1912 = vmatprep.subr.mxu0 0.0
  %1913 = vmatpush2.msra.mxu0 0.0
  %1914 = vmatprep.subr.mxu0 0.0
  %1915 = vmatpush2.msra.mxu0 0.0
  %1916 = vmatprep.subr.mxu0 0.0
  %1917 = vmatpush2.msra.mxu0 0.0
  %1918 = vmatprep.subr.mxu0 0.0
  %1919 = vmatpush2.msra.mxu0 0.0
  %1920 = vmatprep.subr.mxu0 0.0
  %1921 = vmatpush2.msra.mxu0 0.0
  %1922 = vmatprep.subr.mxu0 0.0
  %1923 = vmatpush2.msra.mxu0 0.0
  %1924 = vmatprep.subr.mxu0 0.0
  %1925 = vmatpush2.msra.mxu0 0.0
  %1926 = vmatprep.subr.mxu0 0.0
  %1927 = vmatpush2.msra.mxu0 0.0
  %1928 = vmatprep.subr.mxu0 0.0
  %1929 = vmatpush2.msra.mxu0 0.0
  %1930 = vmatprep.subr.mxu0 0.0
  %1931 = vmatpush2.msra.mxu0 0.0
  %1932 = vmatprep.subr.mxu0 0.0
  %1933 = vmatpush2.msra.mxu0 0.0
  %1934 = vmatprep.subr.mxu0 0.0
  %1935 = vmatpush2.msra.mxu0 0.0
  %1936 = vmatprep.subr.mxu0 0.0
  %1937 = vmatpush2.msra.mxu0 0.0
  %1938 = vmatprep.subr.mxu0 0.0
  %1939 = vmatpush2.msra.mxu0 0.0
  %1940 = vmatprep.mubr.f32.mxu0 0.0
  %1941 = vmatmul.mubr.f32.gmra.mxu0 %v1874
  %v1942 = vpop.f32.mrf.mxu0
  %v1943 = vadd.f32 %v1871, %v1942
  %v1944 = vpop.f32.mrf.mxu0
  %1945 = vdwg.mxu0
  %vm1946 = vcmask 7168
  %1947 = vst.msk [vmem:[%s21] sm:$0xff] %vm1946, %v1943
  // Predicated region
  $region78: #{_forward.1} parent=0 // pred_check
    _
  $region79: #{_forward.1} parent=0 // pred_check_branch
    %1949 = sbr.rel (0) target = $region81
  $region80: #{_forward.1} parent=0 // pred_region
    _
  $region81: #{_forward.1} parent=0 // pred_fallthru
    _
  // Predicated region
  $region82: #{_forward.1} parent=0 // pred_check
    _
  $region83: #{_forward.1} parent=0 // pred_check_branch
    %1951 = sbr.rel (0) target = $region85
  $region84: #{_forward.1} parent=0 // pred_region
    _
  $region85: #{_forward.1} parent=0 // pred_fallthru
    _
  // Predicated region
  $region86: #{_forward.1} parent=0 // pred_check
    _
  $region87: #{_forward.1} parent=0 // pred_check_branch
    %1953 = sbr.rel (0) target = $region89
  $region88: #{_forward.1} parent=0 // pred_region
    _
  $region89: #{_forward.1} parent=0 // pred_fallthru
    _
  // Predicated region
  $region90: #{_forward.1} parent=0 // pred_check
    _
  $region91: #{_forward.1} parent=0 // pred_check_branch
    %1955 = sbr.rel (0) target = $region93
  $region92: #{_forward.1} parent=0 // pred_region
    _
  $region93: #{_forward.1} parent=0 // pred_fallthru
    _
  // Predicated region
  $region94: #{_forward.1} parent=0 // pred_check
    _
  $region95: #{_forward.1} parent=0 // pred_check_branch
    %1957 = sbr.rel (0) target = $region97
  $region96: #{_forward.1} parent=0 // pred_region
    _
  $region97: #{_forward.1} parent=0 // pred_fallthru
    _
  // Predicated region
  $region98: #{_forward.1} parent=0 // pred_check
    _
  $region99: #{_forward.1} parent=0 // pred_check_branch
    %1959 = sbr.rel (0) target = $region101
  $region100: #{_forward.1} parent=0 // pred_region
    _
  $region101: #{_forward.1} parent=0 // pred_fallthru
    _

</llo_original>
